<compile_context>
chip_gen: v5e
topology: v5e:2x2
jax: 0.10.0
libtpu: 0.0.40
codegen_flags: <defaults>
</compile_context>

<pallas_src>
import jax
import jax.numpy as jnp
from jax.experimental import pallas as pl
from jax.experimental.pallas import tpu as pltpu

EPS = 1e-5            # nn.LayerNorm default
HEAD_LANES = 128      # fc_out hidden (64) zero-padded to a full MXU lane width
DEFAULT_TILE_B = 1024 # multiple of 256; ~6 MiB of activations per tile


def _round_up(n, m):
    return ((n + m - 1) // m) * m


def transformer_winner_kernel(
    x_ref,                        # (TB, F)          f32
    w_emb_ref, b_emb_ref,         # (F, D) bf16,     (1, D) f32
    w_attn0_ref, b_attn0_ref,     # (F, D) bf16,     (1, D) f32     layer-0 attn folded into x
    w_attn_ref, b_attn_ref,       # (L, D, D) bf16,  (L, 1, D) f32  fused v_proj@out_proj (slot 0 unused)
    g1_ref, be1_ref,              # (L, 1, D) f32                   norm1 gamma/beta
    w1_ref, b1_ref,               # (L, D, FF) bf16, (L, 1, FF) bf16  FFN linear1
    w2_ref, b2_ref,               # (L, FF, D) bf16, (L, 1, D) f32    FFN linear2
    g2_ref, be2_ref,              # (L, 1, D) f32                   norm2 gamma/beta
    wf1_ref, bf1_ref,             # (D, 128) bf16,   (1, 128) f32   fc_out linear1 (zero-padded 64->128)
    wf2_ref, bf2_ref,             # (8, 128) bf16,   (1, 1) f32     fc_out linear2 (row 0 real, rest 0)
    out_ref,                      # (1, 1, TB)       f32            lane l = probability of tile row l
):
    def layer_norm(h, gamma, beta):
        # var = E[x^2] - E[x]^2: both lane reductions issue without a data dependency.
        mu = jnp.mean(h, axis=-1, keepdims=True)
        ms = jnp.mean(h * h, axis=-1, keepdims=True)
        var = ms - mu * mu
        return (h - mu) * jax.lax.rsqrt(var + EPS) * gamma + beta

    def mm(a, w):
        # bf16 MXU matmul with f32 accumulation (astype is a no-op if already bf16)
        return jnp.dot(a.astype(jnp.bfloat16), w, preferred_element_type=jnp.float32)

    x16 = x_ref[...].astype(jnp.bfloat16)

    # Embedding: (TB, F) @ (F, D) + b
    h = jnp.dot(x16, w_emb_ref[...], preferred_element_type=jnp.float32) + b_emb_ref[...]

    num_layers = w_attn_ref.shape[0]
    for l in range(num_layers):   # static unroll over encoder layers (static weight slices)
        # Self-attention (seq_len == 1): softmax over one key == 1, so
        # MHA(x) = out_proj(v_proj(x)) = x @ (Wv @ Wo) + (bv @ Wo + bo)  [folded in wrapper]
        if l == 0:
            # extra fold through the embedding: runs at K = F instead of K = D
            sa = jnp.dot(x16, w_attn0_ref[...],
                         preferred_element_type=jnp.float32) + b_attn0_ref[...]
        else:
            sa = mm(h, w_attn_ref[l]) + b_attn_ref[l]
        h = layer_norm(h + sa, g1_ref[l], be1_ref[l])            # dropout1 = identity (eval)

        # Feed-forward: f32 MXU accumulate -> single cast -> bias+ReLU on packed bf16 vregs
        ff16 = jnp.maximum(mm(h, w1_ref[l]).astype(jnp.bfloat16) + b1_ref[l], 0)
        ff = mm(ff16, w2_ref[l]) + b2_ref[l]
        h = layer_norm(h + ff, g2_ref[l], be2_ref[l])            # dropout2 = identity (eval)

    # mean over seq dim (length 1) is identity.
    # fc_out head: Linear(D,64)+ReLU zero-padded to 128 lanes (full MXU width).
    z = jnp.maximum(mm(h, wf1_ref[...]) + bf1_ref[...], 0.0)     # (TB, 128); lanes 64.. are 0
    # Linear(64,1) as ONE A @ B^T MXU matmul: logit[0, b] = sum_d wf2[0, d] * z[b, d].
    # This lands the batch dimension on LANES -> a single lane-dense (1, TB) output row,
    # i.e. 4 bytes of HBM writeback per sample (no broadcast write amplification).
    logit = jax.lax.dot_general(
        wf2_ref[...], z.astype(jnp.bfloat16),
        dimension_numbers=(((1,), (1,)), ((), ())),
        preferred_element_type=jnp.float32)[0:1, :] + bf2_ref[...]   # (1, TB)
    prob = jax.nn.sigmoid(logit)
    out_ref[...] = prob.reshape(1, 1, -1)


def init_params(key, input_size, d_model=128, num_layers=2, dim_feedforward=512):
    """Deterministic synthetic parameters in (in, out) layout mirroring the PyTorch module."""
    def linear(k, fan_in, fan_out):
        kw, kb = jax.random.split(k)
        bound = 1.0 / jnp.sqrt(fan_in)
        w = jax.random.uniform(kw, (fan_in, fan_out), jnp.float32, -bound, bound)
        b = jax.random.uniform(kb, (1, fan_out), jnp.float32, -bound, bound)
        return w, b

    keys = jax.random.split(key, 3 + 4 * num_layers)
    it = iter(keys)

    w_emb, b_emb = linear(next(it), input_size, d_model)

    layers = []
    for _ in range(num_layers):
        wv, bv = linear(next(it), d_model, d_model)      # value projection (slice of in_proj)
        wo, bo = linear(next(it), d_model, d_model)      # attention out_proj
        g1 = jnp.ones((1, d_model), jnp.float32); be1 = jnp.zeros((1, d_model), jnp.float32)
        w1, b1 = linear(next(it), d_model, dim_feedforward)
        w2, b2 = linear(next(it), dim_feedforward, d_model)
        g2 = jnp.ones((1, d_model), jnp.float32); be2 = jnp.zeros((1, d_model), jnp.float32)
        layers.append((wv, bv, wo, bo, g1, be1, w1, b1, w2, b2, g2, be2))

    wf1, bf1 = linear(next(it), d_model, 64)
    wf2, bf2 = linear(next(it), 64, 1)
    return dict(w_emb=w_emb, b_emb=b_emb, layers=layers, wf1=wf1, bf1=bf1, wf2=wf2, bf2=bf2)


def prepare_params(raw, head_lanes=HEAD_LANES):
    """Fold attention projections (layer 0 also through the embedding), pad the head to
    128 lanes, lay the final Linear(64,1) out for an A@B^T matmul, cast matmul weights to bf16."""
    f32, bf16 = jnp.float32, jnp.bfloat16

    w_emb_f32, b_emb = raw["w_emb"], raw["b_emb"]

    w_attn, b_attn = [], []
    g1, be1, w1, b1, w2, b2, g2, be2 = ([] for _ in range(8))
    for (wv, bv, wo, bo, g1_, be1_, w1_, b1_, w2_, b2_, g2_, be2_) in raw["layers"]:
        # Exact fold (seq_len == 1): x @ Wv @ Wo + (bv @ Wo + bo)  ->  x @ W_attn + b_attn
        w_attn.append(wv @ wo)
        b_attn.append(bv @ wo + bo)
        g1.append(g1_); be1.append(be1_)
        w1.append(w1_); b1.append(b1_)
        w2.append(w2_); b2.append(b2_)
        g2.append(g2_); be2.append(be2_)
    stack = lambda xs: jnp.stack(xs, axis=0)

    w_attn_f32 = stack(w_attn)            # (L, D, D)
    b_attn_f32 = stack(b_attn)            # (L, 1, D)

    # Layer-0 attention folded all the way back to the raw input (exact algebra):
    #   sa0 = x @ (W_emb @ W_attn0) + (b_emb @ W_attn0 + b_attn0)
    w_attn0 = (w_emb_f32 @ w_attn_f32[0]).astype(bf16)           # (F, D)
    b_attn0 = b_emb @ w_attn_f32[0] + b_attn_f32[0]              # (1, D)

    d_model, n_hidden = raw["wf1"].shape
    wf1p = jnp.zeros((d_model, head_lanes), f32).at[:, :n_hidden].set(raw["wf1"]).astype(bf16)
    bf1p = jnp.zeros((1, head_lanes), f32).at[:, :n_hidden].set(raw["bf1"])
    # Final Linear(64,1) as row 0 of an (8,128) matrix (sublane-padded for the MXU);
    # padded lanes/rows are zero so they contribute nothing to the logit.
    wf2p = jnp.zeros((8, head_lanes), f32).at[0, :n_hidden].set(raw["wf2"][:, 0]).astype(bf16)
    bf2 = raw["bf2"]                                             # (1, 1)

    return (
        w_emb_f32.astype(bf16), b_emb,
        w_attn0, b_attn0,
        w_attn_f32.astype(bf16), b_attn_f32,   # slot 0 kept for shape regularity; unused in-kernel
        stack(g1), stack(be1),
        stack(w1).astype(bf16), stack(b1).astype(bf16),
        stack(w2).astype(bf16), stack(b2),
        stack(g2), stack(be2),
        wf1p, bf1p, wf2p, bf2,
    )


def transformer_winner_forward(x, params, *, tile_b=DEFAULT_TILE_B):
    B, F = x.shape
    weights = tuple(params)

    # --- batch tiling -----------------------------------------------------------------
    # Tiles are multiples of 8 rows with minimal padding.  Once the (8-padded) batch
    # reaches 512 rows we force >=2 grid steps so the "parallel" axis can be sharded
    # across both TensorCores on v7x (on single-TC v5e/v6e it is just a pipelined loop).
    b8 = _round_up(B, 8)
    max_tb = _round_up(max(8, min(tile_b, b8)), 8)
    ntiles = pl.cdiv(b8, max_tb)
    if b8 >= 512:
        ntiles = max(ntiles, 2)
    tb = _round_up(pl.cdiv(b8, ntiles), 8)
    Bp = ntiles * tb
    if Bp != B:
        x = jnp.pad(x, ((0, Bp - B), (0, 0)))    # padded rows produce values we slice off below

    def const_map(ndim):
        # weights: same block every grid step -> stay VMEM-resident (no re-DMA)
        return lambda i: (0,) * ndim

    in_specs = [pl.BlockSpec((tb, F), lambda i: (i, 0))]
    in_specs += [pl.BlockSpec(w.shape, const_map(w.ndim)) for w in weights]
    # One lane-dense probability row per grid step: out[i, 0, l] = p(batch row i*tb + l).
    out_specs = pl.BlockSpec((1, 1, tb), lambda i: (i, 0, 0))

    # Advisory scheduling hint for XLA around the custom call.
    D = weights[0].shape[1]          # d_model
    L = weights[4].shape[0]          # num_layers
    FF = weights[8].shape[2]         # dim_feedforward
    flops = 2 * Bp * (2 * F * D + (L - 1) * D * D + 2 * L * D * FF
                      + D * HEAD_LANES + HEAD_LANES)
    weight_bytes = sum(int(w.size) * w.dtype.itemsize for w in weights)
    cost = pl.CostEstimate(
        flops=int(flops),
        transcendentals=int(Bp * (2 * L + 1)),   # rsqrt per LayerNorm + final sigmoid
        bytes_accessed=int(Bp * F * 4 + Bp * 4 + weight_bytes),
    )

    out = pl.pallas_call(
        transformer_winner_kernel,
        out_shape=jax.ShapeDtypeStruct((ntiles, 1, tb), jnp.float32),
        grid=(ntiles,),
        in_specs=in_specs,
        out_specs=out_specs,
        compiler_params=pltpu.CompilerParams(
            dimension_semantics=("parallel",),       # megacore batch sharding on v7x
            vmem_limit_bytes=32 * 1024 * 1024,       # headroom on v5e's 16 MiB scoped default
        ),
        cost_estimate=cost,
    )(x, *weights)

    # Contiguous flatten (tile i, lane l) -> batch row i*tb + l; drop batch padding.
    return out.reshape(-1)[:B].reshape(B, 1)


if __name__ == "__main__":
    B, INPUT_SIZE = 10, 32
    D_MODEL, NUM_LAYERS, FF = 128, 2, 512

    key = jax.random.PRNGKey(0)
    kx, kp = jax.random.split(key)
    x = jax.random.normal(kx, (B, INPUT_SIZE), jnp.float32)
    raw = init_params(kp, INPUT_SIZE, D_MODEL, NUM_LAYERS, FF)
    params = prepare_params(raw)

    out = jax.block_until_ready(transformer_winner_forward(x, params))

    assert out.shape == (B, 1)
    assert bool(jnp.all(jnp.isfinite(out)))
    assert bool(jnp.all((out > 0.0) & (out < 1.0)))  # sigmoid output range
    print("KERNEL_OK")
</pallas_src>

<mosaic_0001>
module attributes {stable_mosaic.version = 11 : i64} {
  func.func @transformer_winner_kernel(%arg0: i32, %arg1: memref<16x32xf32, #tpu.memory_space<vmem>>, %arg2: memref<32x128xbf16, #tpu.memory_space<vmem>>, %arg3: memref<1x128xf32, #tpu.memory_space<vmem>>, %arg4: memref<32x128xbf16, #tpu.memory_space<vmem>>, %arg5: memref<1x128xf32, #tpu.memory_space<vmem>>, %arg6: memref<2x128x128xbf16, #tpu.memory_space<vmem>>, %arg7: memref<2x1x128xf32, #tpu.memory_space<vmem>>, %arg8: memref<2x1x128xf32, #tpu.memory_space<vmem>>, %arg9: memref<2x1x128xf32, #tpu.memory_space<vmem>>, %arg10: memref<2x128x512xbf16, #tpu.memory_space<vmem>>, %arg11: memref<2x1x512xbf16, #tpu.memory_space<vmem>>, %arg12: memref<2x512x128xbf16, #tpu.memory_space<vmem>>, %arg13: memref<2x1x128xf32, #tpu.memory_space<vmem>>, %arg14: memref<2x1x128xf32, #tpu.memory_space<vmem>>, %arg15: memref<2x1x128xf32, #tpu.memory_space<vmem>>, %arg16: memref<128x128xbf16, #tpu.memory_space<vmem>>, %arg17: memref<1x128xf32, #tpu.memory_space<vmem>>, %arg18: memref<8x128xbf16, #tpu.memory_space<vmem>>, %arg19: memref<1x1xf32, #tpu.memory_space<vmem>>, %arg20: memref<1x1x16xf32, #tpu.memory_space<vmem>>) attributes {dimension_semantics = [#tpu.dimension_semantics<parallel>], iteration_bounds = array<i64: 1>, scalar_prefetch = 0 : i64, scratch_operands = 0 : i64, tpu.core_type = #tpu.core_type<tc>, window_params = [{transform_indices = @transform_0, window_bounds = array<i64: 16, 32>}, {pipeline_mode = #tpu.pipeline_mode<synchronous>, transform_indices = @transform_1, window_bounds = array<i64: 32, 128>}, {pipeline_mode = #tpu.pipeline_mode<synchronous>, transform_indices = @transform_2, window_bounds = array<i64: 1, 128>}, {pipeline_mode = #tpu.pipeline_mode<synchronous>, transform_indices = @transform_3, window_bounds = array<i64: 32, 128>}, {pipeline_mode = #tpu.pipeline_mode<synchronous>, transform_indices = @transform_4, window_bounds = array<i64: 1, 128>}, {pipeline_mode = #tpu.pipeline_mode<synchronous>, transform_indices = @transform_5, window_bounds = array<i64: 2, 128, 128>}, {pipeline_mode = #tpu.pipeline_mode<synchronous>, transform_indices = @transform_6, window_bounds = array<i64: 2, 1, 128>}, {pipeline_mode = #tpu.pipeline_mode<synchronous>, transform_indices = @transform_7, window_bounds = array<i64: 2, 1, 128>}, {pipeline_mode = #tpu.pipeline_mode<synchronous>, transform_indices = @transform_8, window_bounds = array<i64: 2, 1, 128>}, {pipeline_mode = #tpu.pipeline_mode<synchronous>, transform_indices = @transform_9, window_bounds = array<i64: 2, 128, 512>}, {pipeline_mode = #tpu.pipeline_mode<synchronous>, transform_indices = @transform_10, window_bounds = array<i64: 2, 1, 512>}, {pipeline_mode = #tpu.pipeline_mode<synchronous>, transform_indices = @transform_11, window_bounds = array<i64: 2, 512, 128>}, {pipeline_mode = #tpu.pipeline_mode<synchronous>, transform_indices = @transform_12, window_bounds = array<i64: 2, 1, 128>}, {pipeline_mode = #tpu.pipeline_mode<synchronous>, transform_indices = @transform_13, window_bounds = array<i64: 2, 1, 128>}, {pipeline_mode = #tpu.pipeline_mode<synchronous>, transform_indices = @transform_14, window_bounds = array<i64: 2, 1, 128>}, {pipeline_mode = #tpu.pipeline_mode<synchronous>, transform_indices = @transform_15, window_bounds = array<i64: 128, 128>}, {pipeline_mode = #tpu.pipeline_mode<synchronous>, transform_indices = @transform_16, window_bounds = array<i64: 1, 128>}, {pipeline_mode = #tpu.pipeline_mode<synchronous>, transform_indices = @transform_17, window_bounds = array<i64: 8, 128>}, {pipeline_mode = #tpu.pipeline_mode<synchronous>, transform_indices = @transform_18, window_bounds = array<i64: 1, 1>}, {transform_indices = @transform_19, window_bounds = array<i64: 1, 1, 16>}]} {
    %c0 = arith.constant 0 : index
    %c0_0 = arith.constant 0 : index
    %0 = vector.load %arg1[%c0, %c0_0] : memref<16x32xf32, #tpu.memory_space<vmem>>, vector<16x32xf32>
    %1 = arith.truncf %0 : vector<16x32xf32> to vector<16x32xbf16>
    %c0_1 = arith.constant 0 : index
    %c0_2 = arith.constant 0 : index
    %2 = vector.load %arg2[%c0_1, %c0_2] : memref<32x128xbf16, #tpu.memory_space<vmem>>, vector<32x128xbf16>
    %cst = arith.constant dense<0.000000e+00> : vector<16x128xf32>
    %3 = tpu.matmul %1, %2, %cst {dimension_numbers = #tpu.dot_dimension_numbers<[1], [0], [0], [1], [0, 0, 1, 1], [], []>} : vector<16x32xbf16>, vector<32x128xbf16>, vector<16x128xf32> -> vector<16x128xf32>
    %c0_3 = arith.constant 0 : index
    %c0_4 = arith.constant 0 : index
    %4 = vector.load %arg3[%c0_3, %c0_4] : memref<1x128xf32, #tpu.memory_space<vmem>>, vector<1x128xf32>
    %5 = vector.broadcast %4 : vector<1x128xf32> to vector<16x128xf32>
    %6 = arith.addf %3, %5 : vector<16x128xf32>
    %c0_5 = arith.constant 0 : index
    %c0_6 = arith.constant 0 : index
    %7 = vector.load %arg4[%c0_5, %c0_6] : memref<32x128xbf16, #tpu.memory_space<vmem>>, vector<32x128xbf16>
    %cst_7 = arith.constant dense<0.000000e+00> : vector<16x128xf32>
    %8 = tpu.matmul %1, %7, %cst_7 {dimension_numbers = #tpu.dot_dimension_numbers<[1], [0], [0], [1], [0, 0, 1, 1], [], []>} : vector<16x32xbf16>, vector<32x128xbf16>, vector<16x128xf32> -> vector<16x128xf32>
    %c0_8 = arith.constant 0 : index
    %c0_9 = arith.constant 0 : index
    %9 = vector.load %arg5[%c0_8, %c0_9] : memref<1x128xf32, #tpu.memory_space<vmem>>, vector<1x128xf32>
    %10 = vector.broadcast %9 : vector<1x128xf32> to vector<16x128xf32>
    %11 = arith.addf %8, %10 : vector<16x128xf32>
    %12 = arith.addf %6, %11 : vector<16x128xf32>
    %c0_10 = arith.constant 0 : index
    %c0_11 = arith.constant 0 : index
    %c0_12 = arith.constant 0 : index
    %13 = vector.load %arg8[%c0_10, %c0_11, %c0_12] : memref<2x1x128xf32, #tpu.memory_space<vmem>>, vector<1x1x128xf32>
    %14 = vector.shape_cast %13 : vector<1x1x128xf32> to vector<1x128xf32>
    %c0_13 = arith.constant 0 : index
    %c0_14 = arith.constant 0 : index
    %c0_15 = arith.constant 0 : index
    %15 = vector.load %arg9[%c0_13, %c0_14, %c0_15] : memref<2x1x128xf32, #tpu.memory_space<vmem>>, vector<1x1x128xf32>
    %16 = vector.shape_cast %15 : vector<1x1x128xf32> to vector<1x128xf32>
    %cst_16 = arith.constant dense<0.000000e+00> : vector<16xf32>
    %17 = vector.multi_reduction <add>, %12, %cst_16 [1] : vector<16x128xf32> to vector<16xf32>
    %18 = vector.shape_cast %17 : vector<16xf32> to vector<16x1xf32>
    %cst_17 = arith.constant 1.280000e+02 : f32
    %19 = vector.broadcast %cst_17 : f32 to vector<16x1xf32>
    %20 = arith.divf %18, %19 : vector<16x1xf32>
    %21 = arith.mulf %12, %12 : vector<16x128xf32>
    %cst_18 = arith.constant dense<0.000000e+00> : vector<16xf32>
    %22 = vector.multi_reduction <add>, %21, %cst_18 [1] : vector<16x128xf32> to vector<16xf32>
    %23 = vector.shape_cast %22 : vector<16xf32> to vector<16x1xf32>
    %cst_19 = arith.constant 1.280000e+02 : f32
    %24 = vector.broadcast %cst_19 : f32 to vector<16x1xf32>
    %25 = arith.divf %23, %24 : vector<16x1xf32>
    %26 = arith.mulf %20, %20 : vector<16x1xf32>
    %27 = arith.subf %25, %26 : vector<16x1xf32>
    %28 = vector.broadcast %20 : vector<16x1xf32> to vector<16x128xf32>
    %29 = arith.subf %12, %28 : vector<16x128xf32>
    %cst_20 = arith.constant 9.99999974E-6 : f32
    %30 = vector.broadcast %cst_20 : f32 to vector<16x1xf32>
    %31 = arith.addf %27, %30 : vector<16x1xf32>
    %32 = math.rsqrt %31 : vector<16x1xf32>
    %33 = vector.broadcast %32 : vector<16x1xf32> to vector<16x128xf32>
    %34 = arith.mulf %29, %33 : vector<16x128xf32>
    %35 = vector.broadcast %14 : vector<1x128xf32> to vector<16x128xf32>
    %36 = arith.mulf %34, %35 : vector<16x128xf32>
    %37 = vector.broadcast %16 : vector<1x128xf32> to vector<16x128xf32>
    %38 = arith.addf %36, %37 : vector<16x128xf32>
    %c0_21 = arith.constant 0 : index
    %c0_22 = arith.constant 0 : index
    %c0_23 = arith.constant 0 : index
    %39 = vector.load %arg10[%c0_21, %c0_22, %c0_23] : memref<2x128x512xbf16, #tpu.memory_space<vmem>>, vector<1x128x512xbf16>
    %40 = vector.shape_cast %39 : vector<1x128x512xbf16> to vector<128x512xbf16>
    %41 = arith.truncf %38 : vector<16x128xf32> to vector<16x128xbf16>
    %cst_24 = arith.constant dense<0.000000e+00> : vector<16x512xf32>
    %42 = tpu.matmul %41, %40, %cst_24 {dimension_numbers = #tpu.dot_dimension_numbers<[1], [0], [0], [1], [0, 0, 1, 1], [], []>} : vector<16x128xbf16>, vector<128x512xbf16>, vector<16x512xf32> -> vector<16x512xf32>
    %43 = arith.truncf %42 : vector<16x512xf32> to vector<16x512xbf16>
    %c0_25 = arith.constant 0 : index
    %c0_26 = arith.constant 0 : index
    %c0_27 = arith.constant 0 : index
    %44 = vector.load %arg11[%c0_25, %c0_26, %c0_27] : memref<2x1x512xbf16, #tpu.memory_space<vmem>>, vector<1x1x512xbf16>
    %45 = vector.shape_cast %44 : vector<1x1x512xbf16> to vector<1x512xbf16>
    %46 = vector.broadcast %45 : vector<1x512xbf16> to vector<16x512xbf16>
    %47 = arith.addf %43, %46 : vector<16x512xbf16>
    %cst_28 = arith.constant 0.000000e+00 : bf16
    %48 = vector.broadcast %cst_28 : bf16 to vector<16x512xbf16>
    %49 = arith.maximumf %47, %48 : vector<16x512xbf16>
    %c0_29 = arith.constant 0 : index
    %c0_30 = arith.constant 0 : index
    %c0_31 = arith.constant 0 : index
    %50 = vector.load %arg12[%c0_29, %c0_30, %c0_31] : memref<2x512x128xbf16, #tpu.memory_space<vmem>>, vector<1x512x128xbf16>
    %51 = vector.shape_cast %50 : vector<1x512x128xbf16> to vector<512x128xbf16>
    %cst_32 = arith.constant dense<0.000000e+00> : vector<16x128xf32>
    %52 = tpu.matmul %49, %51, %cst_32 {dimension_numbers = #tpu.dot_dimension_numbers<[1], [0], [0], [1], [0, 0, 1, 1], [], []>} : vector<16x512xbf16>, vector<512x128xbf16>, vector<16x128xf32> -> vector<16x128xf32>
    %c0_33 = arith.constant 0 : index
    %c0_34 = arith.constant 0 : index
    %c0_35 = arith.constant 0 : index
    %53 = vector.load %arg13[%c0_33, %c0_34, %c0_35] : memref<2x1x128xf32, #tpu.memory_space<vmem>>, vector<1x1x128xf32>
    %54 = vector.shape_cast %53 : vector<1x1x128xf32> to vector<1x128xf32>
    %55 = vector.broadcast %54 : vector<1x128xf32> to vector<16x128xf32>
    %56 = arith.addf %52, %55 : vector<16x128xf32>
    %57 = arith.addf %38, %56 : vector<16x128xf32>
    %c0_36 = arith.constant 0 : index
    %c0_37 = arith.constant 0 : index
    %c0_38 = arith.constant 0 : index
    %58 = vector.load %arg14[%c0_36, %c0_37, %c0_38] : memref<2x1x128xf32, #tpu.memory_space<vmem>>, vector<1x1x128xf32>
    %59 = vector.shape_cast %58 : vector<1x1x128xf32> to vector<1x128xf32>
    %c0_39 = arith.constant 0 : index
    %c0_40 = arith.constant 0 : index
    %c0_41 = arith.constant 0 : index
    %60 = vector.load %arg15[%c0_39, %c0_40, %c0_41] : memref<2x1x128xf32, #tpu.memory_space<vmem>>, vector<1x1x128xf32>
    %61 = vector.shape_cast %60 : vector<1x1x128xf32> to vector<1x128xf32>
    %cst_42 = arith.constant dense<0.000000e+00> : vector<16xf32>
    %62 = vector.multi_reduction <add>, %57, %cst_42 [1] : vector<16x128xf32> to vector<16xf32>
    %63 = vector.shape_cast %62 : vector<16xf32> to vector<16x1xf32>
    %cst_43 = arith.constant 1.280000e+02 : f32
    %64 = vector.broadcast %cst_43 : f32 to vector<16x1xf32>
    %65 = arith.divf %63, %64 : vector<16x1xf32>
    %66 = arith.mulf %57, %57 : vector<16x128xf32>
    %cst_44 = arith.constant dense<0.000000e+00> : vector<16xf32>
    %67 = vector.multi_reduction <add>, %66, %cst_44 [1] : vector<16x128xf32> to vector<16xf32>
    %68 = vector.shape_cast %67 : vector<16xf32> to vector<16x1xf32>
    %cst_45 = arith.constant 1.280000e+02 : f32
    %69 = vector.broadcast %cst_45 : f32 to vector<16x1xf32>
    %70 = arith.divf %68, %69 : vector<16x1xf32>
    %71 = arith.mulf %65, %65 : vector<16x1xf32>
    %72 = arith.subf %70, %71 : vector<16x1xf32>
    %73 = vector.broadcast %65 : vector<16x1xf32> to vector<16x128xf32>
    %74 = arith.subf %57, %73 : vector<16x128xf32>
    %cst_46 = arith.constant 9.99999974E-6 : f32
    %75 = vector.broadcast %cst_46 : f32 to vector<16x1xf32>
    %76 = arith.addf %72, %75 : vector<16x1xf32>
    %77 = math.rsqrt %76 : vector<16x1xf32>
    %78 = vector.broadcast %77 : vector<16x1xf32> to vector<16x128xf32>
    %79 = arith.mulf %74, %78 : vector<16x128xf32>
    %80 = vector.broadcast %59 : vector<1x128xf32> to vector<16x128xf32>
    %81 = arith.mulf %79, %80 : vector<16x128xf32>
    %82 = vector.broadcast %61 : vector<1x128xf32> to vector<16x128xf32>
    %83 = arith.addf %81, %82 : vector<16x128xf32>
    %c1 = arith.constant 1 : index
    %c0_47 = arith.constant 0 : index
    %c0_48 = arith.constant 0 : index
    %84 = vector.load %arg6[%c1, %c0_47, %c0_48] : memref<2x128x128xbf16, #tpu.memory_space<vmem>>, vector<1x128x128xbf16>
    %85 = vector.shape_cast %84 : vector<1x128x128xbf16> to vector<128x128xbf16>
    %86 = arith.truncf %83 : vector<16x128xf32> to vector<16x128xbf16>
    %cst_49 = arith.constant dense<0.000000e+00> : vector<16x128xf32>
    %87 = tpu.matmul %86, %85, %cst_49 {dimension_numbers = #tpu.dot_dimension_numbers<[1], [0], [0], [1], [0, 0, 1, 1], [], []>} : vector<16x128xbf16>, vector<128x128xbf16>, vector<16x128xf32> -> vector<16x128xf32>
    %c1_50 = arith.constant 1 : index
    %c0_51 = arith.constant 0 : index
    %c0_52 = arith.constant 0 : index
    %88 = vector.load %arg7[%c1_50, %c0_51, %c0_52] : memref<2x1x128xf32, #tpu.memory_space<vmem>>, vector<1x1x128xf32>
    %89 = vector.shape_cast %88 : vector<1x1x128xf32> to vector<1x128xf32>
    %90 = vector.broadcast %89 : vector<1x128xf32> to vector<16x128xf32>
    %91 = arith.addf %87, %90 : vector<16x128xf32>
    %92 = arith.addf %83, %91 : vector<16x128xf32>
    %c1_53 = arith.constant 1 : index
    %c0_54 = arith.constant 0 : index
    %c0_55 = arith.constant 0 : index
    %93 = vector.load %arg8[%c1_53, %c0_54, %c0_55] : memref<2x1x128xf32, #tpu.memory_space<vmem>>, vector<1x1x128xf32>
    %94 = vector.shape_cast %93 : vector<1x1x128xf32> to vector<1x128xf32>
    %c1_56 = arith.constant 1 : index
    %c0_57 = arith.constant 0 : index
    %c0_58 = arith.constant 0 : index
    %95 = vector.load %arg9[%c1_56, %c0_57, %c0_58] : memref<2x1x128xf32, #tpu.memory_space<vmem>>, vector<1x1x128xf32>
    %96 = vector.shape_cast %95 : vector<1x1x128xf32> to vector<1x128xf32>
    %cst_59 = arith.constant dense<0.000000e+00> : vector<16xf32>
    %97 = vector.multi_reduction <add>, %92, %cst_59 [1] : vector<16x128xf32> to vector<16xf32>
    %98 = vector.shape_cast %97 : vector<16xf32> to vector<16x1xf32>
    %cst_60 = arith.constant 1.280000e+02 : f32
    %99 = vector.broadcast %cst_60 : f32 to vector<16x1xf32>
    %100 = arith.divf %98, %99 : vector<16x1xf32>
    %101 = arith.mulf %92, %92 : vector<16x128xf32>
    %cst_61 = arith.constant dense<0.000000e+00> : vector<16xf32>
    %102 = vector.multi_reduction <add>, %101, %cst_61 [1] : vector<16x128xf32> to vector<16xf32>
    %103 = vector.shape_cast %102 : vector<16xf32> to vector<16x1xf32>
    %cst_62 = arith.constant 1.280000e+02 : f32
    %104 = vector.broadcast %cst_62 : f32 to vector<16x1xf32>
    %105 = arith.divf %103, %104 : vector<16x1xf32>
    %106 = arith.mulf %100, %100 : vector<16x1xf32>
    %107 = arith.subf %105, %106 : vector<16x1xf32>
    %108 = vector.broadcast %100 : vector<16x1xf32> to vector<16x128xf32>
    %109 = arith.subf %92, %108 : vector<16x128xf32>
    %cst_63 = arith.constant 9.99999974E-6 : f32
    %110 = vector.broadcast %cst_63 : f32 to vector<16x1xf32>
    %111 = arith.addf %107, %110 : vector<16x1xf32>
    %112 = math.rsqrt %111 : vector<16x1xf32>
    %113 = vector.broadcast %112 : vector<16x1xf32> to vector<16x128xf32>
    %114 = arith.mulf %109, %113 : vector<16x128xf32>
    %115 = vector.broadcast %94 : vector<1x128xf32> to vector<16x128xf32>
    %116 = arith.mulf %114, %115 : vector<16x128xf32>
    %117 = vector.broadcast %96 : vector<1x128xf32> to vector<16x128xf32>
    %118 = arith.addf %116, %117 : vector<16x128xf32>
    %c1_64 = arith.constant 1 : index
    %c0_65 = arith.constant 0 : index
    %c0_66 = arith.constant 0 : index
    %119 = vector.load %arg10[%c1_64, %c0_65, %c0_66] : memref<2x128x512xbf16, #tpu.memory_space<vmem>>, vector<1x128x512xbf16>
    %120 = vector.shape_cast %119 : vector<1x128x512xbf16> to vector<128x512xbf16>
    %121 = arith.truncf %118 : vector<16x128xf32> to vector<16x128xbf16>
    %cst_67 = arith.constant dense<0.000000e+00> : vector<16x512xf32>
    %122 = tpu.matmul %121, %120, %cst_67 {dimension_numbers = #tpu.dot_dimension_numbers<[1], [0], [0], [1], [0, 0, 1, 1], [], []>} : vector<16x128xbf16>, vector<128x512xbf16>, vector<16x512xf32> -> vector<16x512xf32>
    %123 = arith.truncf %122 : vector<16x512xf32> to vector<16x512xbf16>
    %c1_68 = arith.constant 1 : index
    %c0_69 = arith.constant 0 : index
    %c0_70 = arith.constant 0 : index
    %124 = vector.load %arg11[%c1_68, %c0_69, %c0_70] : memref<2x1x512xbf16, #tpu.memory_space<vmem>>, vector<1x1x512xbf16>
    %125 = vector.shape_cast %124 : vector<1x1x512xbf16> to vector<1x512xbf16>
    %126 = vector.broadcast %125 : vector<1x512xbf16> to vector<16x512xbf16>
    %127 = arith.addf %123, %126 : vector<16x512xbf16>
    %cst_71 = arith.constant 0.000000e+00 : bf16
    %128 = vector.broadcast %cst_71 : bf16 to vector<16x512xbf16>
    %129 = arith.maximumf %127, %128 : vector<16x512xbf16>
    %c1_72 = arith.constant 1 : index
    %c0_73 = arith.constant 0 : index
    %c0_74 = arith.constant 0 : index
    %130 = vector.load %arg12[%c1_72, %c0_73, %c0_74] : memref<2x512x128xbf16, #tpu.memory_space<vmem>>, vector<1x512x128xbf16>
    %131 = vector.shape_cast %130 : vector<1x512x128xbf16> to vector<512x128xbf16>
    %cst_75 = arith.constant dense<0.000000e+00> : vector<16x128xf32>
    %132 = tpu.matmul %129, %131, %cst_75 {dimension_numbers = #tpu.dot_dimension_numbers<[1], [0], [0], [1], [0, 0, 1, 1], [], []>} : vector<16x512xbf16>, vector<512x128xbf16>, vector<16x128xf32> -> vector<16x128xf32>
    %c1_76 = arith.constant 1 : index
    %c0_77 = arith.constant 0 : index
    %c0_78 = arith.constant 0 : index
    %133 = vector.load %arg13[%c1_76, %c0_77, %c0_78] : memref<2x1x128xf32, #tpu.memory_space<vmem>>, vector<1x1x128xf32>
    %134 = vector.shape_cast %133 : vector<1x1x128xf32> to vector<1x128xf32>
    %135 = vector.broadcast %134 : vector<1x128xf32> to vector<16x128xf32>
    %136 = arith.addf %132, %135 : vector<16x128xf32>
    %137 = arith.addf %118, %136 : vector<16x128xf32>
    %c1_79 = arith.constant 1 : index
    %c0_80 = arith.constant 0 : index
    %c0_81 = arith.constant 0 : index
    %138 = vector.load %arg14[%c1_79, %c0_80, %c0_81] : memref<2x1x128xf32, #tpu.memory_space<vmem>>, vector<1x1x128xf32>
    %139 = vector.shape_cast %138 : vector<1x1x128xf32> to vector<1x128xf32>
    %c1_82 = arith.constant 1 : index
    %c0_83 = arith.constant 0 : index
    %c0_84 = arith.constant 0 : index
    %140 = vector.load %arg15[%c1_82, %c0_83, %c0_84] : memref<2x1x128xf32, #tpu.memory_space<vmem>>, vector<1x1x128xf32>
    %141 = vector.shape_cast %140 : vector<1x1x128xf32> to vector<1x128xf32>
    %cst_85 = arith.constant dense<0.000000e+00> : vector<16xf32>
    %142 = vector.multi_reduction <add>, %137, %cst_85 [1] : vector<16x128xf32> to vector<16xf32>
    %143 = vector.shape_cast %142 : vector<16xf32> to vector<16x1xf32>
    %cst_86 = arith.constant 1.280000e+02 : f32
    %144 = vector.broadcast %cst_86 : f32 to vector<16x1xf32>
    %145 = arith.divf %143, %144 : vector<16x1xf32>
    %146 = arith.mulf %137, %137 : vector<16x128xf32>
    %cst_87 = arith.constant dense<0.000000e+00> : vector<16xf32>
    %147 = vector.multi_reduction <add>, %146, %cst_87 [1] : vector<16x128xf32> to vector<16xf32>
    %148 = vector.shape_cast %147 : vector<16xf32> to vector<16x1xf32>
    %cst_88 = arith.constant 1.280000e+02 : f32
    %149 = vector.broadcast %cst_88 : f32 to vector<16x1xf32>
    %150 = arith.divf %148, %149 : vector<16x1xf32>
    %151 = arith.mulf %145, %145 : vector<16x1xf32>
    %152 = arith.subf %150, %151 : vector<16x1xf32>
    %153 = vector.broadcast %145 : vector<16x1xf32> to vector<16x128xf32>
    %154 = arith.subf %137, %153 : vector<16x128xf32>
    %cst_89 = arith.constant 9.99999974E-6 : f32
    %155 = vector.broadcast %cst_89 : f32 to vector<16x1xf32>
    %156 = arith.addf %152, %155 : vector<16x1xf32>
    %157 = math.rsqrt %156 : vector<16x1xf32>
    %158 = vector.broadcast %157 : vector<16x1xf32> to vector<16x128xf32>
    %159 = arith.mulf %154, %158 : vector<16x128xf32>
    %160 = vector.broadcast %139 : vector<1x128xf32> to vector<16x128xf32>
    %161 = arith.mulf %159, %160 : vector<16x128xf32>
    %162 = vector.broadcast %141 : vector<1x128xf32> to vector<16x128xf32>
    %163 = arith.addf %161, %162 : vector<16x128xf32>
    %c0_90 = arith.constant 0 : index
    %c0_91 = arith.constant 0 : index
    %164 = vector.load %arg16[%c0_90, %c0_91] : memref<128x128xbf16, #tpu.memory_space<vmem>>, vector<128x128xbf16>
    %165 = arith.truncf %163 : vector<16x128xf32> to vector<16x128xbf16>
    %cst_92 = arith.constant dense<0.000000e+00> : vector<16x128xf32>
    %166 = tpu.matmul %165, %164, %cst_92 {dimension_numbers = #tpu.dot_dimension_numbers<[1], [0], [0], [1], [0, 0, 1, 1], [], []>} : vector<16x128xbf16>, vector<128x128xbf16>, vector<16x128xf32> -> vector<16x128xf32>
    %c0_93 = arith.constant 0 : index
    %c0_94 = arith.constant 0 : index
    %167 = vector.load %arg17[%c0_93, %c0_94] : memref<1x128xf32, #tpu.memory_space<vmem>>, vector<1x128xf32>
    %168 = vector.broadcast %167 : vector<1x128xf32> to vector<16x128xf32>
    %169 = arith.addf %166, %168 : vector<16x128xf32>
    %cst_95 = arith.constant 0.000000e+00 : f32
    %170 = vector.broadcast %cst_95 : f32 to vector<16x128xf32>
    %171 = arith.maximumf %169, %170 : vector<16x128xf32>
    %c0_96 = arith.constant 0 : index
    %c0_97 = arith.constant 0 : index
    %172 = vector.load %arg18[%c0_96, %c0_97] : memref<8x128xbf16, #tpu.memory_space<vmem>>, vector<8x128xbf16>
    %173 = arith.truncf %171 : vector<16x128xf32> to vector<16x128xbf16>
    %cst_98 = arith.constant dense<0.000000e+00> : vector<8x16xf32>
    %174 = tpu.matmul %172, %173, %cst_98 {dimension_numbers = #tpu.dot_dimension_numbers<[1], [1], [0], [0], [0, 0, 1, 0], [], []>} : vector<8x128xbf16>, vector<16x128xbf16>, vector<8x16xf32> -> vector<8x16xf32>
    %175 = vector.extract_strided_slice %174 {offsets = [0, 0], sizes = [1, 16], strides = [1, 1]} : vector<8x16xf32> to vector<1x16xf32>
    %c0_99 = arith.constant 0 : index
    %c0_100 = arith.constant 0 : index
    %176 = vector.load %arg19[%c0_99, %c0_100] : memref<1x1xf32, #tpu.memory_space<vmem>>, vector<1x1xf32>
    %177 = vector.broadcast %176 : vector<1x1xf32> to vector<1x16xf32>
    %178 = arith.addf %175, %177 : vector<1x16xf32>
    %179 = arith.negf %178 : vector<1x16xf32>
    %180 = math.exp %179 : vector<1x16xf32>
    %cst_101 = arith.constant 1.000000e+00 : f32
    %181 = vector.broadcast %cst_101 : f32 to vector<1x16xf32>
    %182 = arith.addf %181, %180 : vector<1x16xf32>
    %183 = arith.divf %181, %182 : vector<1x16xf32>
    %184 = vector.shape_cast %183 : vector<1x16xf32> to vector<1x1x16xf32>
    %c0_102 = arith.constant 0 : index
    %c0_103 = arith.constant 0 : index
    %c0_104 = arith.constant 0 : index
    %185 = vector.load %arg20[%c0_102, %c0_103, %c0_104] : memref<1x1x16xf32, #tpu.memory_space<vmem>>, vector<1x1x16xf32>
    tpu.vector_store %arg20[%c0_102, %c0_103, %c0_104], %184 {strides = array<i32>} : memref<1x1x16xf32, #tpu.memory_space<vmem>>, vector<1x1x16xf32>,
    return
  }
  func.func @transform_0(%arg0: i32) -> (i32, i32) {
    %c0_i32 = arith.constant 0 : i32
    %c0_i32_0 = arith.constant 0 : i32
    return %arg0, %c0_i32 : i32, i32
  }
  func.func @transform_1(%arg0: i32) -> (i32, i32) {
    %c0_i32 = arith.constant 0 : i32
    %c0_i32_0 = arith.constant 0 : i32
    %c0_i32_1 = arith.constant 0 : i32
    return %c0_i32, %c0_i32_0 : i32, i32
  }
  func.func @transform_2(%arg0: i32) -> (i32, i32) {
    %c0_i32 = arith.constant 0 : i32
    %c0_i32_0 = arith.constant 0 : i32
    %c0_i32_1 = arith.constant 0 : i32
    return %c0_i32, %c0_i32_0 : i32, i32
  }
  func.func @transform_3(%arg0: i32) -> (i32, i32) {
    %c0_i32 = arith.constant 0 : i32
    %c0_i32_0 = arith.constant 0 : i32
    %c0_i32_1 = arith.constant 0 : i32
    return %c0_i32, %c0_i32_0 : i32, i32
  }
  func.func @transform_4(%arg0: i32) -> (i32, i32) {
    %c0_i32 = arith.constant 0 : i32
    %c0_i32_0 = arith.constant 0 : i32
    %c0_i32_1 = arith.constant 0 : i32
    return %c0_i32, %c0_i32_0 : i32, i32
  }
  func.func @transform_5(%arg0: i32) -> (i32, i32, i32) {
    %c0_i32 = arith.constant 0 : i32
    %c0_i32_0 = arith.constant 0 : i32
    %c0_i32_1 = arith.constant 0 : i32
    %c0_i32_2 = arith.constant 0 : i32
    return %c0_i32, %c0_i32_0, %c0_i32_1 : i32, i32, i32
  }
  func.func @transform_6(%arg0: i32) -> (i32, i32, i32) {
    %c0_i32 = arith.constant 0 : i32
    %c0_i32_0 = arith.constant 0 : i32
    %c0_i32_1 = arith.constant 0 : i32
    %c0_i32_2 = arith.constant 0 : i32
    return %c0_i32, %c0_i32_0, %c0_i32_1 : i32, i32, i32
  }
  func.func @transform_7(%arg0: i32) -> (i32, i32, i32) {
    %c0_i32 = arith.constant 0 : i32
    %c0_i32_0 = arith.constant 0 : i32
    %c0_i32_1 = arith.constant 0 : i32
    %c0_i32_2 = arith.constant 0 : i32
    return %c0_i32, %c0_i32_0, %c0_i32_1 : i32, i32, i32
  }
  func.func @transform_8(%arg0: i32) -> (i32, i32, i32) {
    %c0_i32 = arith.constant 0 : i32
    %c0_i32_0 = arith.constant 0 : i32
    %c0_i32_1 = arith.constant 0 : i32
    %c0_i32_2 = arith.constant 0 : i32
    return %c0_i32, %c0_i32_0, %c0_i32_1 : i32, i32, i32
  }
  func.func @transform_9(%arg0: i32) -> (i32, i32, i32) {
    %c0_i32 = arith.constant 0 : i32
    %c0_i32_0 = arith.constant 0 : i32
    %c0_i32_1 = arith.constant 0 : i32
    %c0_i32_2 = arith.constant 0 : i32
    return %c0_i32, %c0_i32_0, %c0_i32_1 : i32, i32, i32
  }
  func.func @transform_10(%arg0: i32) -> (i32, i32, i32) {
    %c0_i32 = arith.constant 0 : i32
    %c0_i32_0 = arith.constant 0 : i32
    %c0_i32_1 = arith.constant 0 : i32
    %c0_i32_2 = arith.constant 0 : i32
    return %c0_i32, %c0_i32_0, %c0_i32_1 : i32, i32, i32
  }
  func.func @transform_11(%arg0: i32) -> (i32, i32, i32) {
    %c0_i32 = arith.constant 0 : i32
    %c0_i32_0 = arith.constant 0 : i32
    %c0_i32_1 = arith.constant 0 : i32
    %c0_i32_2 = arith.constant 0 : i32
    return %c0_i32, %c0_i32_0, %c0_i32_1 : i32, i32, i32
  }
  func.func @transform_12(%arg0: i32) -> (i32, i32, i32) {
    %c0_i32 = arith.constant 0 : i32
    %c0_i32_0 = arith.constant 0 : i32
    %c0_i32_1 = arith.constant 0 : i32
    %c0_i32_2 = arith.constant 0 : i32
    return %c0_i32, %c0_i32_0, %c0_i32_1 : i32, i32, i32
  }
  func.func @transform_13(%arg0: i32) -> (i32, i32, i32) {
    %c0_i32 = arith.constant 0 : i32
    %c0_i32_0 = arith.constant 0 : i32
    %c0_i32_1 = arith.constant 0 : i32
    %c0_i32_2 = arith.constant 0 : i32
    return %c0_i32, %c0_i32_0, %c0_i32_1 : i32, i32, i32
  }
  func.func @transform_14(%arg0: i32) -> (i32, i32, i32) {
    %c0_i32 = arith.constant 0 : i32
    %c0_i32_0 = arith.constant 0 : i32
    %c0_i32_1 = arith.constant 0 : i32
    %c0_i32_2 = arith.constant 0 : i32
    return %c0_i32, %c0_i32_0, %c0_i32_1 : i32, i32, i32
  }
  func.func @transform_15(%arg0: i32) -> (i32, i32) {
    %c0_i32 = arith.constant 0 : i32
    %c0_i32_0 = arith.constant 0 : i32
    %c0_i32_1 = arith.constant 0 : i32
    return %c0_i32, %c0_i32_0 : i32, i32
  }
  func.func @transform_16(%arg0: i32) -> (i32, i32) {
    %c0_i32 = arith.constant 0 : i32
    %c0_i32_0 = arith.constant 0 : i32
    %c0_i32_1 = arith.constant 0 : i32
    return %c0_i32, %c0_i32_0 : i32, i32
  }
  func.func @transform_17(%arg0: i32) -> (i32, i32) {
    %c0_i32 = arith.constant 0 : i32
    %c0_i32_0 = arith.constant 0 : i32
    %c0_i32_1 = arith.constant 0 : i32
    return %c0_i32, %c0_i32_0 : i32, i32
  }
  func.func @transform_18(%arg0: i32) -> (i32, i32) {
    %c0_i32 = arith.constant 0 : i32
    %c0_i32_0 = arith.constant 0 : i32
    %c0_i32_1 = arith.constant 0 : i32
    return %c0_i32, %c0_i32_0 : i32, i32
  }
  func.func @transform_19(%arg0: i32) -> (i32, i32, i32) {
    %c0_i32 = arith.constant 0 : i32
    %c0_i32_0 = arith.constant 0 : i32
    %c0_i32_1 = arith.constant 0 : i32
    return %arg0, %c0_i32, %c0_i32_0 : i32, i32, i32
  }
}

</mosaic_0001>

<llo_original>
// kernel: tpu_custom_call.1
$region0: #{tpu_custom_call.1}
  #allocation0 [shape = 'u32[]', space=smem, size = 0x4, offset = 0x4, fixed_abs, tag = 'smem constant byte address 0x4 - core index']
  #allocation1 [shape = 'u32[72,128]{1,0:T(1,128)}', space=vmem, size = 0x9000, scoped, tag = 'internal scratch']
  #allocation2 [shape = 'f32[1,1]{1,0:T(1,128)S(1)}', space=vmem, size = 0x200, scoped, tag = 'scoped memory for tpu_custom_call.1']
  %s0 = inlined_call_operand.hbm [shape: f32[16,32], index: 0, kind: input, shape index: {}]
  %s1 = inlined_call_operand.hbm [shape: bf16[32,128], index: 1, kind: input, shape index: {}]
  %s2 = inlined_call_operand.hbm [shape: f32[1,128], index: 2, kind: input, shape index: {}]
  %s3 = inlined_call_operand.vmem [shape: bf16[32,128], index: 3, kind: input, shape index: {}]
  %s4 = inlined_call_operand.hbm [shape: f32[1,128], index: 4, kind: input, shape index: {}]
  %s5 = inlined_call_operand.hbm [shape: bf16[2,128,128], index: 5, kind: input, shape index: {}]
  %s6 = inlined_call_operand.hbm [shape: f32[2,1,128], index: 6, kind: input, shape index: {}]
  %s7 = inlined_call_operand.hbm [shape: f32[2,1,128], index: 7, kind: input, shape index: {}]
  %s8 = inlined_call_operand.hbm [shape: f32[2,1,128], index: 8, kind: input, shape index: {}]
  %s9 = inlined_call_operand.hbm [shape: bf16[2,128,512], index: 9, kind: input, shape index: {}]
  %s10 = inlined_call_operand.vmem [shape: bf16[2,1,512], index: 10, kind: input, shape index: {}]
  %s11 = inlined_call_operand.hbm [shape: bf16[2,512,128], index: 11, kind: input, shape index: {}]
  %s12 = inlined_call_operand.hbm [shape: f32[2,1,128], index: 12, kind: input, shape index: {}]
  %s13 = inlined_call_operand.vmem [shape: f32[2,1,128], index: 13, kind: input, shape index: {}]
  %s14 = inlined_call_operand.hbm [shape: f32[2,1,128], index: 14, kind: input, shape index: {}]
  %s15 = inlined_call_operand.hbm [shape: bf16[128,128], index: 15, kind: input, shape index: {}]
  %s16 = inlined_call_operand.vmem [shape: f32[1,128], index: 16, kind: input, shape index: {}]
  %s17 = inlined_call_operand.vmem [shape: bf16[8,128], index: 17, kind: input, shape index: {}]
  %s18 = inlined_call_operand.<no memory space> [shape: f32[1,1], index: 18, kind: input, shape index: {}]
  %s19 = inlined_call_operand.hbm [shape: f32[1,1,16], index: 19, kind: output, shape index: {}]
  %s20 = sld [smem:[#allocation0]]
  $region138: #{tpu_custom_call.1} parent=0
    _
  %s22 = ssub.s32 1, %s20
  %s23 = scalar_select 0, %s22, %s20
  %v24 = vstv %s18
  %25 = vst [vmem:[#allocation2] sm:$0x1] %v24
  $region1: #{tpu_custom_call.1} parent=0
    #allocation3 [shape = 'u8[8192]{0}', space=vmem, size = 0x2000, scoped, tag = 'input window, operand 0, single buffered']
    #allocation4 [shape = 's32[1]{0}', space=sflag, size = 0x4, scoped, tag = 'scoped memory for tpu_custom_call.1']
    #allocation5 [shape = 's32[1]{0}', space=sflag, size = 0x4, scoped, tag = 'scoped memory for tpu_custom_call.1']
    #allocation6 [shape = 'u8[8192]{0}', space=vmem, size = 0x2000, scoped, tag = 'input window, operand 1, single buffered']
    #allocation7 [shape = 's32[1]{0}', space=sflag, size = 0x4, scoped, tag = 'scoped memory for tpu_custom_call.1']
    #allocation8 [shape = 'u8[512]{0}', space=vmem, size = 0x400, scoped, tag = 'input window, operand 2, single buffered']
    #allocation9 [shape = 'u8[512]{0}', space=vmem, size = 0x400, scoped, tag = 'input window, operand 4, single buffered']
    #allocation10 [shape = 's32[1]{0}', space=sflag, size = 0x4, scoped, tag = 'scoped memory for tpu_custom_call.1']
    #allocation11 [shape = 'u8[65536]{0}', space=vmem, size = 0x10000, scoped, tag = 'input window, operand 5, single buffered']
    #allocation12 [shape = 'u8[1024]{0}', space=vmem, size = 0x400, scoped, tag = 'input window, operand 6, single buffered']
    #allocation13 [shape = 's32[1]{0}', space=sflag, size = 0x4, scoped, tag = 'scoped memory for tpu_custom_call.1']
    #allocation14 [shape = 'u8[1024]{0}', space=vmem, size = 0x400, scoped, tag = 'input window, operand 7, single buffered']
    #allocation15 [shape = 'u8[1024]{0}', space=vmem, size = 0x400, scoped, tag = 'input window, operand 8, single buffered']
    #allocation16 [shape = 's32[1]{0}', space=sflag, size = 0x4, scoped, tag = 'scoped memory for tpu_custom_call.1']
    #allocation17 [shape = 'u8[262144]{0}', space=vmem, size = 0x40000, scoped, tag = 'input window, operand 9, single buffered']
    #allocation18 [shape = 'u8[262144]{0}', space=vmem, size = 0x40000, scoped, tag = 'input window, operand 11, single buffered']
    #allocation19 [shape = 's32[1]{0}', space=sflag, size = 0x4, scoped, tag = 'scoped memory for tpu_custom_call.1']
    #allocation20 [shape = 'u8[1024]{0}', space=vmem, size = 0x400, scoped, tag = 'input window, operand 12, single buffered']
    #allocation21 [shape = 'u8[1024]{0}', space=vmem, size = 0x400, scoped, tag = 'input window, operand 14, single buffered']
    #allocation22 [shape = 's32[1]{0}', space=sflag, size = 0x4, scoped, tag = 'scoped memory for tpu_custom_call.1']
    #allocation23 [shape = 'u8[32768]{0}', space=vmem, size = 0x8000, scoped, tag = 'input window, operand 15, single buffered']
    #allocation24 [shape = 'u8[512]{0}', space=vmem, size = 0x400, scoped, tag = 'output window, operand 0, single buffered']
    %26 = vsyncpa [#allocation4], 0
    %27 = vsyncpa [#allocation7], 0
    %28 = vsyncpa [#allocation10], 0
    %29 = vsyncpa [#allocation13], 0
    %30 = vsyncpa [#allocation16], 0
    %31 = vsyncpa [#allocation19], 0
    %32 = vsyncpa [#allocation22], 0
    %33 = vsyncpa [#allocation5], 0
    // Predicated region
    $region2: #{tpu_custom_call.1} parent=1 // pred_check
      _
    $region3: #{tpu_custom_call.1} parent=1 // pred_check_branch
      %35 = sbr.rel (0) target = $region5
    $region4: #{tpu_custom_call.1} parent=1 // pred_region
      %37 = vsyncadd [#allocation4], 0
      %s38 = sshll.u32 %s0, 4
      %s39 = int_to_ptr.hbm [resolvable:$true] %s38
      %s40 = sshll.u32 [#allocation3], 4
      %s41 = int_to_ptr.vmem [resolvable:$true] %s40
      %46 = dma.hbm_to_vmem [thread:$0]  %s39, 256, %s41, [#allocation4], 128, 128, 8
    $region5: #{tpu_custom_call.1} parent=1 // pred_fallthru
      _
    // Predicated region
    $region6: #{tpu_custom_call.1} parent=1 // pred_check
      _
    $region7: #{tpu_custom_call.1} parent=1 // pred_check_branch
      %48 = sbr.rel (0) target = $region9
    $region8: #{tpu_custom_call.1} parent=1 // pred_region
      %50 = vsyncadd [#allocation7], 0
      %s51 = sshll.u32 %s1, 4
      %s52 = int_to_ptr.hbm [resolvable:$true] %s51
      %s53 = sshll.u32 [#allocation6], 4
      %s54 = int_to_ptr.vmem [resolvable:$true] %s53
      %59 = dma.hbm_to_vmem [thread:$0]  %s52, 256, %s54, [#allocation7], 64, 64, 4
    $region9: #{tpu_custom_call.1} parent=1 // pred_fallthru
      _
    // Predicated region
    $region10: #{tpu_custom_call.1} parent=1 // pred_check
      _
    $region11: #{tpu_custom_call.1} parent=1 // pred_check_branch
      %61 = sbr.rel (0) target = $region13
    $region12: #{tpu_custom_call.1} parent=1 // pred_region
      %63 = vsyncadd [#allocation7], 0
      %s65 = sshll.u32 %s2, 4
      %s66 = int_to_ptr.hbm [resolvable:$true] %s65
      %s67 = sshll.u32 [#allocation8], 4
      %s68 = int_to_ptr.vmem [resolvable:$true] %s67
      %70 = dma.hbm_to_vmem [thread:$0]  %s66, 16, %s68, [#allocation7]
    $region13: #{tpu_custom_call.1} parent=1 // pred_fallthru
      _
    // Predicated region
    $region14: #{tpu_custom_call.1} parent=1 // pred_check
      _
    $region15: #{tpu_custom_call.1} parent=1 // pred_check_branch
      %72 = sbr.rel (0) target = $region17
    $region16: #{tpu_custom_call.1} parent=1 // pred_region
      _
    $region17: #{tpu_custom_call.1} parent=1 // pred_fallthru
      _
    // Predicated region
    $region18: #{tpu_custom_call.1} parent=1 // pred_check
      _
    $region19: #{tpu_custom_call.1} parent=1 // pred_check_branch
      %74 = sbr.rel (0) target = $region21
    $region20: #{tpu_custom_call.1} parent=1 // pred_region
      %76 = vsyncadd [#allocation10], 0
      %s78 = sshll.u32 %s4, 4
      %s79 = int_to_ptr.hbm [resolvable:$true] %s78
      %s80 = sshll.u32 [#allocation9], 4
      %s81 = int_to_ptr.vmem [resolvable:$true] %s80
      %83 = dma.hbm_to_vmem [thread:$0]  %s79, 16, %s81, [#allocation10]
    $region21: #{tpu_custom_call.1} parent=1 // pred_fallthru
      _
    // Predicated region
    $region22: #{tpu_custom_call.1} parent=1 // pred_check
      _
    $region23: #{tpu_custom_call.1} parent=1 // pred_check_branch
      %85 = sbr.rel (0) target = $region25
    $region24: #{tpu_custom_call.1} parent=1 // pred_region
      %87 = vsyncadd [#allocation10], 0
      %s88 = sshll.u32 %s5, 4
      %s89 = int_to_ptr.hbm [resolvable:$true] %s88
      %s90 = sshll.u32 [#allocation11], 4
      %s91 = int_to_ptr.vmem [resolvable:$true] %s90
      %96 = dma.hbm_to_vmem [thread:$0]  %s89, 2048, %s91, [#allocation10], 64, 64, 4
    $region25: #{tpu_custom_call.1} parent=1 // pred_fallthru
      _
    // Predicated region
    $region26: #{tpu_custom_call.1} parent=1 // pred_check
      _
    $region27: #{tpu_custom_call.1} parent=1 // pred_check_branch
      %98 = sbr.rel (0) target = $region29
    $region28: #{tpu_custom_call.1} parent=1 // pred_region
      %100 = vsyncadd [#allocation13], 0
      %s101 = sshll.u32 %s6, 4
      %s102 = int_to_ptr.hbm [resolvable:$true] %s101
      %s103 = sshll.u32 [#allocation12], 4
      %s104 = int_to_ptr.vmem [resolvable:$true] %s103
      %109 = dma.hbm_to_vmem [thread:$0]  %s102, 32, %s104, [#allocation13], 16, 16, 1
    $region29: #{tpu_custom_call.1} parent=1 // pred_fallthru
      _
    // Predicated region
    $region30: #{tpu_custom_call.1} parent=1 // pred_check
      _
    $region31: #{tpu_custom_call.1} parent=1 // pred_check_branch
      %111 = sbr.rel (0) target = $region33
    $region32: #{tpu_custom_call.1} parent=1 // pred_region
      %113 = vsyncadd [#allocation13], 0
      %s114 = sshll.u32 %s7, 4
      %s115 = int_to_ptr.hbm [resolvable:$true] %s114
      %s116 = sshll.u32 [#allocation14], 4
      %s117 = int_to_ptr.vmem [resolvable:$true] %s116
      %122 = dma.hbm_to_vmem [thread:$0]  %s115, 32, %s117, [#allocation13], 16, 16, 1
    $region33: #{tpu_custom_call.1} parent=1 // pred_fallthru
      _
    // Predicated region
    $region34: #{tpu_custom_call.1} parent=1 // pred_check
      _
    $region35: #{tpu_custom_call.1} parent=1 // pred_check_branch
      %124 = sbr.rel (0) target = $region37
    $region36: #{tpu_custom_call.1} parent=1 // pred_region
      %126 = vsyncadd [#allocation16], 0
      %s127 = sshll.u32 %s8, 4
      %s128 = int_to_ptr.hbm [resolvable:$true] %s127
      %s129 = sshll.u32 [#allocation15], 4
      %s130 = int_to_ptr.vmem [resolvable:$true] %s129
      %135 = dma.hbm_to_vmem [thread:$0]  %s128, 32, %s130, [#allocation16], 16, 16, 1
    $region37: #{tpu_custom_call.1} parent=1 // pred_fallthru
      _
    // Predicated region
    $region38: #{tpu_custom_call.1} parent=1 // pred_check
      _
    $region39: #{tpu_custom_call.1} parent=1 // pred_check_branch
      %137 = sbr.rel (0) target = $region41
    $region40: #{tpu_custom_call.1} parent=1 // pred_region
      %139 = vsyncadd [#allocation16], 0
      %s140 = sshll.u32 %s9, 4
      %s141 = int_to_ptr.hbm [resolvable:$true] %s140
      %s142 = sshll.u32 [#allocation17], 4
      %s143 = int_to_ptr.vmem [resolvable:$true] %s142
      %148 = dma.hbm_to_vmem [thread:$0]  %s141, 8192, %s143, [#allocation16], 256, 256, 16
    $region41: #{tpu_custom_call.1} parent=1 // pred_fallthru
      _
    // Predicated region
    $region42: #{tpu_custom_call.1} parent=1 // pred_check
      _
    $region43: #{tpu_custom_call.1} parent=1 // pred_check_branch
      %150 = sbr.rel (0) target = $region45
    $region44: #{tpu_custom_call.1} parent=1 // pred_region
      _
    $region45: #{tpu_custom_call.1} parent=1 // pred_fallthru
      _
    // Predicated region
    $region46: #{tpu_custom_call.1} parent=1 // pred_check
      _
    $region47: #{tpu_custom_call.1} parent=1 // pred_check_branch
      %152 = sbr.rel (0) target = $region49
    $region48: #{tpu_custom_call.1} parent=1 // pred_region
      %154 = vsyncadd [#allocation19], 0
      %s155 = sshll.u32 %s11, 4
      %s156 = int_to_ptr.hbm [resolvable:$true] %s155
      %s157 = sshll.u32 [#allocation18], 4
      %s158 = int_to_ptr.vmem [resolvable:$true] %s157
      %163 = dma.hbm_to_vmem [thread:$0]  %s156, 8192, %s158, [#allocation19], 64, 64, 4
    $region49: #{tpu_custom_call.1} parent=1 // pred_fallthru
      _
    // Predicated region
    $region50: #{tpu_custom_call.1} parent=1 // pred_check
      _
    $region51: #{tpu_custom_call.1} parent=1 // pred_check_branch
      %165 = sbr.rel (0) target = $region53
    $region52: #{tpu_custom_call.1} parent=1 // pred_region
      %167 = vsyncadd [#allocation19], 0
      %s168 = sshll.u32 %s12, 4
      %s169 = int_to_ptr.hbm [resolvable:$true] %s168
      %s170 = sshll.u32 [#allocation20], 4
      %s171 = int_to_ptr.vmem [resolvable:$true] %s170
      %176 = dma.hbm_to_vmem [thread:$0]  %s169, 32, %s171, [#allocation19], 16, 16, 1
    $region53: #{tpu_custom_call.1} parent=1 // pred_fallthru
      _
    // Predicated region
    $region54: #{tpu_custom_call.1} parent=1 // pred_check
      _
    $region55: #{tpu_custom_call.1} parent=1 // pred_check_branch
      %178 = sbr.rel (0) target = $region57
    $region56: #{tpu_custom_call.1} parent=1 // pred_region
      _
    $region57: #{tpu_custom_call.1} parent=1 // pred_fallthru
      _
    // Predicated region
    $region58: #{tpu_custom_call.1} parent=1 // pred_check
      _
    $region59: #{tpu_custom_call.1} parent=1 // pred_check_branch
      %180 = sbr.rel (0) target = $region61
    $region60: #{tpu_custom_call.1} parent=1 // pred_region
      %182 = vsyncadd [#allocation22], 0
      %s183 = sshll.u32 %s14, 4
      %s184 = int_to_ptr.hbm [resolvable:$true] %s183
      %s185 = sshll.u32 [#allocation21], 4
      %s186 = int_to_ptr.vmem [resolvable:$true] %s185
      %191 = dma.hbm_to_vmem [thread:$0]  %s184, 32, %s186, [#allocation22], 16, 16, 1
    $region61: #{tpu_custom_call.1} parent=1 // pred_fallthru
      _
    // Predicated region
    $region62: #{tpu_custom_call.1} parent=1 // pred_check
      _
    $region63: #{tpu_custom_call.1} parent=1 // pred_check_branch
      %193 = sbr.rel (0) target = $region65
    $region64: #{tpu_custom_call.1} parent=1 // pred_region
      %195 = vsyncadd [#allocation22], 0
      %s196 = sshll.u32 %s15, 4
      %s197 = int_to_ptr.hbm [resolvable:$true] %s196
      %s198 = sshll.u32 [#allocation23], 4
      %s199 = int_to_ptr.vmem [resolvable:$true] %s198
      %204 = dma.hbm_to_vmem [thread:$0]  %s197, 1024, %s199, [#allocation22], 64, 64, 4
    $region65: #{tpu_custom_call.1} parent=1 // pred_fallthru
      _
    // Predicated region
    $region66: #{tpu_custom_call.1} parent=1 // pred_check
      _
    $region67: #{tpu_custom_call.1} parent=1 // pred_check_branch
      %206 = sbr.rel (0) target = $region69
    $region68: #{tpu_custom_call.1} parent=1 // pred_region
      _
    $region69: #{tpu_custom_call.1} parent=1 // pred_fallthru
      _
    // Predicated region
    $region70: #{tpu_custom_call.1} parent=1 // pred_check
      _
    $region71: #{tpu_custom_call.1} parent=1 // pred_check_branch
      %208 = sbr.rel (0) target = $region73
    $region72: #{tpu_custom_call.1} parent=1 // pred_region
      _
    $region73: #{tpu_custom_call.1} parent=1 // pred_fallthru
      _
    // Predicated region
    $region74: #{tpu_custom_call.1} parent=1 // pred_check
      _
    $region75: #{tpu_custom_call.1} parent=1 // pred_check_branch
      %210 = sbr.rel (0) target = $region77
    $region76: #{tpu_custom_call.1} parent=1 // pred_region
      _
    $region77: #{tpu_custom_call.1} parent=1 // pred_fallthru
      _
    // Predicated region
    $region78: #{tpu_custom_call.1} parent=1 // pred_check
      _
    $region79: #{tpu_custom_call.1} parent=1 // pred_check_branch
      %212 = sbr.rel (0) target = $region81
    $region80: #{tpu_custom_call.1} parent=1 // pred_region
      %214 = dma.done [#allocation4], 256
    $region81: #{tpu_custom_call.1} parent=1 // pred_fallthru
      _
    // Predicated region
    $region82: #{tpu_custom_call.1} parent=1 // pred_check
      _
    $region83: #{tpu_custom_call.1} parent=1 // pred_check_branch
      %216 = sbr.rel (0) target = $region85
    $region84: #{tpu_custom_call.1} parent=1 // pred_region
      %218 = dma.done [#allocation7], 256
    $region85: #{tpu_custom_call.1} parent=1 // pred_fallthru
      _
    // Predicated region
    $region86: #{tpu_custom_call.1} parent=1 // pred_check
      _
    $region87: #{tpu_custom_call.1} parent=1 // pred_check_branch
      %220 = sbr.rel (0) target = $region89
    $region88: #{tpu_custom_call.1} parent=1 // pred_region
      %222 = dma.done [#allocation7], 16
    $region89: #{tpu_custom_call.1} parent=1 // pred_fallthru
      _
    // Predicated region
    $region90: #{tpu_custom_call.1} parent=1 // pred_check
      _
    $region91: #{tpu_custom_call.1} parent=1 // pred_check_branch
      %224 = sbr.rel (0) target = $region93
    $region92: #{tpu_custom_call.1} parent=1 // pred_region
      %226 = dma.done [#allocation10], 16
    $region93: #{tpu_custom_call.1} parent=1 // pred_fallthru
      _
    // Predicated region
    $region94: #{tpu_custom_call.1} parent=1 // pred_check
      _
    $region95: #{tpu_custom_call.1} parent=1 // pred_check_branch
      %228 = sbr.rel (0) target = $region97
    $region96: #{tpu_custom_call.1} parent=1 // pred_region
      %230 = dma.done [#allocation10], 2048
    $region97: #{tpu_custom_call.1} parent=1 // pred_fallthru
      _
    // Predicated region
    $region98: #{tpu_custom_call.1} parent=1 // pred_check
      _
    $region99: #{tpu_custom_call.1} parent=1 // pred_check_branch
      %232 = sbr.rel (0) target = $region101
    $region100: #{tpu_custom_call.1} parent=1 // pred_region
      %234 = dma.done [#allocation13], 32
    $region101: #{tpu_custom_call.1} parent=1 // pred_fallthru
      _
    // Predicated region
    $region102: #{tpu_custom_call.1} parent=1 // pred_check
      _
    $region103: #{tpu_custom_call.1} parent=1 // pred_check_branch
      %236 = sbr.rel (0) target = $region105
    $region104: #{tpu_custom_call.1} parent=1 // pred_region
      %238 = dma.done [#allocation13], 32
    $region105: #{tpu_custom_call.1} parent=1 // pred_fallthru
      _
    // Predicated region
    $region106: #{tpu_custom_call.1} parent=1 // pred_check
      _
    $region107: #{tpu_custom_call.1} parent=1 // pred_check_branch
      %240 = sbr.rel (0) target = $region109
    $region108: #{tpu_custom_call.1} parent=1 // pred_region
      %242 = dma.done [#allocation16], 32
    $region109: #{tpu_custom_call.1} parent=1 // pred_fallthru
      _
    // Predicated region
    $region110: #{tpu_custom_call.1} parent=1 // pred_check
      _
    $region111: #{tpu_custom_call.1} parent=1 // pred_check_branch
      %244 = sbr.rel (0) target = $region113
    $region112: #{tpu_custom_call.1} parent=1 // pred_region
      %246 = dma.done [#allocation16], 8192
    $region113: #{tpu_custom_call.1} parent=1 // pred_fallthru
      _
    // Predicated region
    $region114: #{tpu_custom_call.1} parent=1 // pred_check
      _
    $region115: #{tpu_custom_call.1} parent=1 // pred_check_branch
      %248 = sbr.rel (0) target = $region117
    $region116: #{tpu_custom_call.1} parent=1 // pred_region
      %250 = dma.done [#allocation19], 8192
    $region117: #{tpu_custom_call.1} parent=1 // pred_fallthru
      _
    // Predicated region
    $region118: #{tpu_custom_call.1} parent=1 // pred_check
      _
    $region119: #{tpu_custom_call.1} parent=1 // pred_check_branch
      %252 = sbr.rel (0) target = $region121
    $region120: #{tpu_custom_call.1} parent=1 // pred_region
      %254 = dma.done [#allocation19], 32
    $region121: #{tpu_custom_call.1} parent=1 // pred_fallthru
      _
    // Predicated region
    $region122: #{tpu_custom_call.1} parent=1 // pred_check
      _
    $region123: #{tpu_custom_call.1} parent=1 // pred_check_branch
      %256 = sbr.rel (0) target = $region125
    $region124: #{tpu_custom_call.1} parent=1 // pred_region
      %258 = dma.done [#allocation22], 32
    $region125: #{tpu_custom_call.1} parent=1 // pred_fallthru
      _
    // Predicated region
    $region126: #{tpu_custom_call.1} parent=1 // pred_check
      _
    $region127: #{tpu_custom_call.1} parent=1 // pred_check_branch
      %260 = sbr.rel (0) target = $region129
    $region128: #{tpu_custom_call.1} parent=1 // pred_region
      %262 = dma.done [#allocation22], 1024
    $region129: #{tpu_custom_call.1} parent=1 // pred_fallthru
      _
    %v264 = vld [vmem:[#allocation3] sm:$0xff]
    %v265 = vld [vmem:[#allocation3 + $0x8] sm:$0xff]
    %v266 = vpack.c.bf16 %v265, %v264
    %v267 = vld [vmem:[#allocation6] sm:$0xf]
    %v268 = vld [vmem:[#allocation6 + $0x4] sm:$0xf]
    %v269 = vld [vmem:[#allocation6 + $0x8] sm:$0xf]
    %v270 = vld [vmem:[#allocation6 + $0xc] sm:$0xf]
    %v271 = vld [vmem:[#allocation8] sm:$0x1]
    %v273 = vperm.slane %v271, 0
    %v279 = vunpack.c.l.b16 %v267
    %v280 = vunpack.c.l.b16 %v268
    %v281 = vunpack.c.l.b16 %v269
    %v282 = vunpack.c.l.b16 %v270
    %v283 = vpack.c.b16 %v280, %v279
    %v284 = vpack.c.b16 %v282, %v281
    %vm287 = vcmask 261120
    %v289 = vsel %vm287, %v266, 0
    %291 = vmatpush.bf16.msra.mxu0 0
    %292 = vmatpush.bf16.msra.mxu0 0
    %293 = vmatpush.bf16.msra.mxu0 0
    %294 = vmatpush.bf16.msra.mxu0 0
    %295 = vmatpush.bf16.msra.mxu0 0
    %296 = vmatpush.bf16.msra.mxu0 0
    %297 = vmatpush.bf16.msra.mxu0 %v284
    %298 = vmatpush.bf16.msra.mxu0 %v283
    %299 = vmatmul.bf16.gmra.mxu0 %v289
    %v300 = vpop.f32.mrf.mxu0
    %v301 = vadd.f32 %v273, %v300
    %v302 = vpop.f32.mrf.mxu0
    %v303 = vadd.f32 %v273, %v302
    %304 = vdwg.mxu0
    %v305 = vld [vmem:[%s3] sm:$0xf]
    %v306 = vld [vmem:[%s3 + $0x4] sm:$0xf]
    %v307 = vld [vmem:[%s3 + $0x8] sm:$0xf]
    %v308 = vld [vmem:[%s3 + $0xc] sm:$0xf]
    %v309 = vld [vmem:[#allocation9] sm:$0x1]
    %v311 = vperm.slane %v309, 0
    %v317 = vunpack.c.l.b16 %v305
    %v318 = vunpack.c.l.b16 %v306
    %v319 = vunpack.c.l.b16 %v307
    %v320 = vunpack.c.l.b16 %v308
    %v321 = vpack.c.b16 %v318, %v317
    %v322 = vpack.c.b16 %v320, %v319
    %325 = vmatpush.bf16.msra.mxu0 0
    %326 = vmatpush.bf16.msra.mxu0 0
    %327 = vmatpush.bf16.msra.mxu0 0
    %328 = vmatpush.bf16.msra.mxu0 0
    %329 = vmatpush.bf16.msra.mxu0 0
    %330 = vmatpush.bf16.msra.mxu0 0
    %331 = vmatpush.bf16.msra.mxu0 %v322
    %332 = vmatpush.bf16.msra.mxu0 %v321
    %333 = vmatmul.bf16.gmra.mxu0 %v289
    %v334 = vpop.f32.mrf.mxu0
    %v335 = vadd.f32 %v311, %v334
    %v336 = vpop.f32.mrf.mxu0
    %v337 = vadd.f32 %v311, %v336
    %338 = vdwg.mxu0
    %v339 = vadd.f32 %v301, %v335
    %v340 = vadd.f32 %v303, %v337
    %v341 = vld [vmem:[#allocation14] sm:$0x1]
    %v342 = vld [vmem:[#allocation15] sm:$0x1]
    %343 = vadd.xlane.f32.xlu0 %v339
    %v344 = vpop.xlane.xlu0 %343
    %345 = vadd.xlane.f32.xlu0 %v340
    %v346 = vpop.xlane.xlu0 %345
    %v347 = vrcp.pop 128.0
    %v348 = vmul.f32 128.0, %v347
    %v349 = vsub.f32 1.0, %v348
    %v350 = vmul.f32 %v347, %v349
    %v351 = vadd.f32 %v347, %v350
    %vm352 = vweird.f32 %v347
    %v353 = vsel %vm352, %v347, %v351
    %v354 = vmul.f32 %v344, %v353
    %v355 = vmul.f32 %v346, %v353
    %v356 = vmul.f32 %v339, %v339
    %v357 = vmul.f32 %v340, %v340
    %358 = vadd.xlane.f32.xlu0 %v356
    %v359 = vpop.xlane.xlu0 %358
    %360 = vadd.xlane.f32.xlu0 %v357
    %v361 = vpop.xlane.xlu0 %360
    %v362 = vmul.f32 %v359, %v353
    %v363 = vmul.f32 %v361, %v353
    %v364 = vmul.f32 %v354, %v354
    %v365 = vmul.f32 %v355, %v355
    %v366 = vsub.f32 %v362, %v364
    %v367 = vsub.f32 %v363, %v365
    %v368 = vsub.f32 %v339, %v354
    %v369 = vsub.f32 %v340, %v355
    %v370 = vadd.f32 %v366, 1e-05
    %v371 = vadd.f32 %v367, 1e-05
    %v372 = vrsqrt.pop %v370
    %v373 = vmul.f32 %v372, %v370
    %v374 = vmul.f32 %v373, %v372
    %v375 = vmul.f32 0.5, %v374
    %v376 = vsub.f32 1.5, %v375
    %v377 = vmul.f32 %v372, %v376
    %vm378 = vweird.f32 %v370
    %vm379 = vweird.f32 %v372
    %vm380 = vmor %vm378, %vm379
    %v381 = vsel %vm380, %v372, %v377
    %v382 = vrsqrt.pop %v371
    %v383 = vmul.f32 %v382, %v371
    %v384 = vmul.f32 %v383, %v382
    %v385 = vmul.f32 0.5, %v384
    %v386 = vsub.f32 1.5, %v385
    %v387 = vmul.f32 %v382, %v386
    %vm388 = vweird.f32 %v371
    %vm389 = vweird.f32 %v382
    %vm390 = vmor %vm388, %vm389
    %v391 = vsel %vm390, %v382, %v387
    %v392 = vmul.f32 %v368, %v381
    %v393 = vmul.f32 %v369, %v391
    %v395 = vperm.slane %v341, 0
    %v397 = vmul.f32 %v392, %v395
    %v398 = vmul.f32 %v393, %v395
    %v400 = vperm.slane %v342, 0
    %v402 = vadd.f32 %v397, %v400
    %v403 = vadd.f32 %v398, %v400
    %v404 = vld [vmem:[#allocation17] sm:$0xff]
    %v405 = vld [vmem:[#allocation17 + $0x8] sm:$0xff]
    %v406 = vld [vmem:[#allocation17 + $0x10] sm:$0xff]
    %v407 = vld [vmem:[#allocation17 + $0x18] sm:$0xff]
    %v408 = vld [vmem:[#allocation17 + $0x20] sm:$0xff]
    %v409 = vld [vmem:[#allocation17 + $0x28] sm:$0xff]
    %v410 = vld [vmem:[#allocation17 + $0x30] sm:$0xff]
    %v411 = vld [vmem:[#allocation17 + $0x38] sm:$0xff]
    %v412 = vld [vmem:[#allocation17 + $0x40] sm:$0xff]
    %v413 = vld [vmem:[#allocation17 + $0x48] sm:$0xff]
    %v414 = vld [vmem:[#allocation17 + $0x50] sm:$0xff]
    %v415 = vld [vmem:[#allocation17 + $0x58] sm:$0xff]
    %v416 = vld [vmem:[#allocation17 + $0x60] sm:$0xff]
    %v417 = vld [vmem:[#allocation17 + $0x68] sm:$0xff]
    %v418 = vld [vmem:[#allocation17 + $0x70] sm:$0xff]
    %v419 = vld [vmem:[#allocation17 + $0x78] sm:$0xff]
    %v420 = vld [vmem:[#allocation17 + $0x80] sm:$0xff]
    %v421 = vld [vmem:[#allocation17 + $0x88] sm:$0xff]
    %v422 = vld [vmem:[#allocation17 + $0x90] sm:$0xff]
    %v423 = vld [vmem:[#allocation17 + $0x98] sm:$0xff]
    %v424 = vld [vmem:[#allocation17 + $0xa0] sm:$0xff]
    %v425 = vld [vmem:[#allocation17 + $0xa8] sm:$0xff]
    %v426 = vld [vmem:[#allocation17 + $0xb0] sm:$0xff]
    %v427 = vld [vmem:[#allocation17 + $0xb8] sm:$0xff]
    %v428 = vld [vmem:[#allocation17 + $0xc0] sm:$0xff]
    %v429 = vld [vmem:[#allocation17 + $0xc8] sm:$0xff]
    %v430 = vld [vmem:[#allocation17 + $0xd0] sm:$0xff]
    %v431 = vld [vmem:[#allocation17 + $0xd8] sm:$0xff]
    %v432 = vld [vmem:[#allocation17 + $0xe0] sm:$0xff]
    %v433 = vld [vmem:[#allocation17 + $0xe8] sm:$0xff]
    %v434 = vld [vmem:[#allocation17 + $0xf0] sm:$0xff]
    %v435 = vld [vmem:[#allocation17 + $0xf8] sm:$0xff]
    %v436 = vpack.c.bf16 %v403, %v402
    %v469 = vunpack.c.l.b16 %v404
    %v470 = vunpack.c.h.b16 %v404
    %v471 = vunpack.c.l.b16 %v405
    %v472 = vunpack.c.h.b16 %v405
    %v473 = vunpack.c.l.b16 %v406
    %v474 = vunpack.c.h.b16 %v406
    %v475 = vunpack.c.l.b16 %v407
    %v476 = vunpack.c.h.b16 %v407
    %v477 = vunpack.c.l.b16 %v408
    %v478 = vunpack.c.h.b16 %v408
    %v479 = vunpack.c.l.b16 %v409
    %v480 = vunpack.c.h.b16 %v409
    %v481 = vunpack.c.l.b16 %v410
    %v482 = vunpack.c.h.b16 %v410
    %v483 = vunpack.c.l.b16 %v411
    %v484 = vunpack.c.h.b16 %v411
    %v485 = vunpack.c.l.b16 %v412
    %v486 = vunpack.c.h.b16 %v412
    %v487 = vunpack.c.l.b16 %v413
    %v488 = vunpack.c.h.b16 %v413
    %v489 = vunpack.c.l.b16 %v414
    %v490 = vunpack.c.h.b16 %v414
    %v491 = vunpack.c.l.b16 %v415
    %v492 = vunpack.c.h.b16 %v415
    %v493 = vunpack.c.l.b16 %v416
    %v494 = vunpack.c.h.b16 %v416
    %v495 = vunpack.c.l.b16 %v417
    %v496 = vunpack.c.h.b16 %v417
    %v497 = vunpack.c.l.b16 %v418
    %v498 = vunpack.c.h.b16 %v418
    %v499 = vunpack.c.l.b16 %v419
    %v500 = vunpack.c.h.b16 %v419
    %v501 = vunpack.c.l.b16 %v420
    %v502 = vunpack.c.h.b16 %v420
    %v503 = vunpack.c.l.b16 %v421
    %v504 = vunpack.c.h.b16 %v421
    %v505 = vunpack.c.l.b16 %v422
    %v506 = vunpack.c.h.b16 %v422
    %v507 = vunpack.c.l.b16 %v423
    %v508 = vunpack.c.h.b16 %v423
    %v509 = vunpack.c.l.b16 %v424
    %v510 = vunpack.c.h.b16 %v424
    %v511 = vunpack.c.l.b16 %v425
    %v512 = vunpack.c.h.b16 %v425
    %v513 = vunpack.c.l.b16 %v426
    %v514 = vunpack.c.h.b16 %v426
    %v515 = vunpack.c.l.b16 %v427
    %v516 = vunpack.c.h.b16 %v427
    %v517 = vunpack.c.l.b16 %v428
    %v518 = vunpack.c.h.b16 %v428
    %v519 = vunpack.c.l.b16 %v429
    %v520 = vunpack.c.h.b16 %v429
    %v521 = vunpack.c.l.b16 %v430
    %v522 = vunpack.c.h.b16 %v430
    %v523 = vunpack.c.l.b16 %v431
    %v524 = vunpack.c.h.b16 %v431
    %v525 = vunpack.c.l.b16 %v432
    %v526 = vunpack.c.h.b16 %v432
    %v527 = vunpack.c.l.b16 %v433
    %v528 = vunpack.c.h.b16 %v433
    %v529 = vunpack.c.l.b16 %v434
    %v530 = vunpack.c.h.b16 %v434
    %v531 = vunpack.c.l.b16 %v435
    %v532 = vunpack.c.h.b16 %v435
    %v533 = vpack.c.b16 %v473, %v469
    %v534 = vpack.c.b16 %v474, %v470
    %v535 = vpack.c.b16 %v475, %v471
    %v536 = vpack.c.b16 %v476, %v472
    %v537 = vpack.c.b16 %v481, %v477
    %v538 = vpack.c.b16 %v482, %v478
    %v539 = vpack.c.b16 %v483, %v479
    %v540 = vpack.c.b16 %v484, %v480
    %v541 = vpack.c.b16 %v489, %v485
    %v542 = vpack.c.b16 %v490, %v486
    %v543 = vpack.c.b16 %v491, %v487
    %v544 = vpack.c.b16 %v492, %v488
    %v545 = vpack.c.b16 %v497, %v493
    %v546 = vpack.c.b16 %v498, %v494
    %v547 = vpack.c.b16 %v499, %v495
    %v548 = vpack.c.b16 %v500, %v496
    %v549 = vpack.c.b16 %v505, %v501
    %v550 = vpack.c.b16 %v506, %v502
    %v551 = vpack.c.b16 %v507, %v503
    %v552 = vpack.c.b16 %v508, %v504
    %v553 = vpack.c.b16 %v513, %v509
    %v554 = vpack.c.b16 %v514, %v510
    %v555 = vpack.c.b16 %v515, %v511
    %v556 = vpack.c.b16 %v516, %v512
    %v557 = vpack.c.b16 %v521, %v517
    %v558 = vpack.c.b16 %v522, %v518
    %v559 = vpack.c.b16 %v523, %v519
    %v560 = vpack.c.b16 %v524, %v520
    %v561 = vpack.c.b16 %v529, %v525
    %v562 = vpack.c.b16 %v530, %v526
    %v563 = vpack.c.b16 %v531, %v527
    %v564 = vpack.c.b16 %v532, %v528
    %597 = vmatpush.bf16.msra.mxu0 %v561
    %598 = vmatpush.bf16.msra.mxu0 %v557
    %599 = vmatpush.bf16.msra.mxu0 %v553
    %600 = vmatpush.bf16.msra.mxu0 %v549
    %601 = vmatpush.bf16.msra.mxu0 %v545
    %602 = vmatpush.bf16.msra.mxu0 %v541
    %603 = vmatpush.bf16.msra.mxu0 %v537
    %604 = vmatpush.bf16.msra.mxu0 %v533
    %605 = vmatmul.bf16.gmra.mxu0 %v436
    %v606 = vpop.f32.mrf.mxu0
    %v607 = vadd.f32 0.0, %v606
    %v608 = vpop.f32.mrf.mxu0
    %v609 = vadd.f32 0.0, %v608
    %610 = vdwg.mxu0
    %611 = vmatpush.bf16.msra.mxu0 %v562
    %612 = vmatpush.bf16.msra.mxu0 %v558
    %613 = vmatpush.bf16.msra.mxu0 %v554
    %614 = vmatpush.bf16.msra.mxu0 %v550
    %615 = vmatpush.bf16.msra.mxu0 %v546
    %616 = vmatpush.bf16.msra.mxu0 %v542
    %617 = vmatpush.bf16.msra.mxu0 %v538
    %618 = vmatpush.bf16.msra.mxu0 %v534
    %619 = vmatmul.bf16.gmra.mxu0 %v436
    %v620 = vpop.f32.mrf.mxu0
    %v621 = vadd.f32 0.0, %v620
    %v622 = vpop.f32.mrf.mxu0
    %v623 = vadd.f32 0.0, %v622
    %624 = vdwg.mxu0
    %625 = vmatpush.bf16.msra.mxu0 %v563
    %626 = vmatpush.bf16.msra.mxu0 %v559
    %627 = vmatpush.bf16.msra.mxu0 %v555
    %628 = vmatpush.bf16.msra.mxu0 %v551
    %629 = vmatpush.bf16.msra.mxu0 %v547
    %630 = vmatpush.bf16.msra.mxu0 %v543
    %631 = vmatpush.bf16.msra.mxu0 %v539
    %632 = vmatpush.bf16.msra.mxu0 %v535
    %633 = vmatmul.bf16.gmra.mxu0 %v436
    %v634 = vpop.f32.mrf.mxu0
    %v635 = vadd.f32 0.0, %v634
    %v636 = vpop.f32.mrf.mxu0
    %v637 = vadd.f32 0.0, %v636
    %638 = vdwg.mxu0
    %639 = vmatpush.bf16.msra.mxu0 %v564
    %640 = vmatpush.bf16.msra.mxu0 %v560
    %641 = vmatpush.bf16.msra.mxu0 %v556
    %642 = vmatpush.bf16.msra.mxu0 %v552
    %643 = vmatpush.bf16.msra.mxu0 %v548
    %644 = vmatpush.bf16.msra.mxu0 %v544
    %645 = vmatpush.bf16.msra.mxu0 %v540
    %646 = vmatpush.bf16.msra.mxu0 %v536
    %647 = vmatmul.bf16.gmra.mxu0 %v436
    %v648 = vpop.f32.mrf.mxu0
    %v649 = vadd.f32 0.0, %v648
    %v650 = vpop.f32.mrf.mxu0
    %v651 = vadd.f32 0.0, %v650
    %652 = vdwg.mxu0
    %v653 = vpack.c.bf16 %v621, %v607
    %v654 = vpack.c.bf16 %v649, %v635
    %v655 = vpack.c.bf16 %v623, %v609
    %v656 = vpack.c.bf16 %v651, %v637
    %v657 = vld [vmem:[%s10] sm:$0xf]
    %659 = vst [vmem:[#allocation1] ss:$9 sm:$0xff] %v657
    %v660 = vld [vmem:[#allocation1] sm:$0xff]
    %v661 = vld [vmem:[#allocation1 + $0x9] sm:$0xff]
    %v662 = vld [vmem:[#allocation1 + $0x12] sm:$0xff]
    %v663 = vld [vmem:[#allocation1 + $0x1b] sm:$0xff]
    %v664 = vpack.i.b16 %v660, %v660
    %v666 = vperm.slane %v664, 0
    %v667 = vpack.i.b16 %v661, %v661
    %v669 = vperm.slane %v667, 0
    %v670 = vpack.i.b16 %v662, %v662
    %v672 = vperm.slane %v670, 0
    %v673 = vpack.i.b16 %v663, %v663
    %v675 = vperm.slane %v673, 0
    %v676 = vunpack.c.l.bf16 %v653
    %v677 = vunpack.c.h.bf16 %v653
    %v678 = vunpack.c.l.bf16 %v654
    %v679 = vunpack.c.h.bf16 %v654
    %v680 = vunpack.c.l.bf16 %v655
    %v681 = vunpack.c.h.bf16 %v655
    %v682 = vunpack.c.l.bf16 %v656
    %v683 = vunpack.c.h.bf16 %v656
    %v684 = vunpack.c.l.bf16 %v666
    %v685 = vunpack.c.l.bf16 %v669
    %v686 = vunpack.c.l.bf16 %v672
    %v687 = vunpack.c.l.bf16 %v675
    %v688 = vadd.f32 %v676, %v684
    %v689 = vadd.f32 %v677, %v685
    %v690 = vadd.f32 %v678, %v686
    %v691 = vadd.f32 %v679, %v687
    %v692 = vadd.f32 %v680, %v684
    %v693 = vadd.f32 %v681, %v685
    %v694 = vadd.f32 %v682, %v686
    %v695 = vadd.f32 %v683, %v687
    %v696 = vpack.c.bf16 %v689, %v688
    %v697 = vpack.c.bf16 %v691, %v690
    %v698 = vpack.c.bf16 %v693, %v692
    %v699 = vpack.c.bf16 %v695, %v694
    %v700 = vunpack.c.l.bf16 %v696
    %v701 = vunpack.c.h.bf16 %v696
    %v702 = vunpack.c.l.bf16 %v697
    %v703 = vunpack.c.h.bf16 %v697
    %v704 = vunpack.c.l.bf16 %v698
    %v705 = vunpack.c.h.bf16 %v698
    %v706 = vunpack.c.l.bf16 %v699
    %v707 = vunpack.c.h.bf16 %v699
    %v708 = vmax.f32 %v700, 0.0
    %v709 = vmax.f32 %v701, 0.0
    %v710 = vmax.f32 %v702, 0.0
    %v711 = vmax.f32 %v703, 0.0
    %v712 = vmax.f32 %v704, 0.0
    %v713 = vmax.f32 %v705, 0.0
    %v714 = vmax.f32 %v706, 0.0
    %v715 = vmax.f32 %v707, 0.0
    %v716 = vpack.c.bf16 %v712, %v708
    %v717 = vpack.c.bf16 %v713, %v709
    %v718 = vpack.c.bf16 %v714, %v710
    %v719 = vpack.c.bf16 %v715, %v711
    %v720 = vld [vmem:[#allocation18] sm:$0xf]
    %v721 = vld [vmem:[#allocation18 + $0x4] sm:$0xf]
    %v722 = vld [vmem:[#allocation18 + $0x8] sm:$0xf]
    %v723 = vld [vmem:[#allocation18 + $0xc] sm:$0xf]
    %v724 = vld [vmem:[#allocation18 + $0x10] sm:$0xf]
    %v725 = vld [vmem:[#allocation18 + $0x14] sm:$0xf]
    %v726 = vld [vmem:[#allocation18 + $0x18] sm:$0xf]
    %v727 = vld [vmem:[#allocation18 + $0x1c] sm:$0xf]
    %v728 = vld [vmem:[#allocation18 + $0x20] sm:$0xf]
    %v729 = vld [vmem:[#allocation18 + $0x24] sm:$0xf]
    %v730 = vld [vmem:[#allocation18 + $0x28] sm:$0xf]
    %v731 = vld [vmem:[#allocation18 + $0x2c] sm:$0xf]
    %v732 = vld [vmem:[#allocation18 + $0x30] sm:$0xf]
    %v733 = vld [vmem:[#allocation18 + $0x34] sm:$0xf]
    %v734 = vld [vmem:[#allocation18 + $0x38] sm:$0xf]
    %v735 = vld [vmem:[#allocation18 + $0x3c] sm:$0xf]
    %v736 = vld [vmem:[#allocation18 + $0x40] sm:$0xf]
    %v737 = vld [vmem:[#allocation18 + $0x44] sm:$0xf]
    %v738 = vld [vmem:[#allocation18 + $0x48] sm:$0xf]
    %v739 = vld [vmem:[#allocation18 + $0x4c] sm:$0xf]
    %v740 = vld [vmem:[#allocation18 + $0x50] sm:$0xf]
    %v741 = vld [vmem:[#allocation18 + $0x54] sm:$0xf]
    %v742 = vld [vmem:[#allocation18 + $0x58] sm:$0xf]
    %v743 = vld [vmem:[#allocation18 + $0x5c] sm:$0xf]
    %v744 = vld [vmem:[#allocation18 + $0x60] sm:$0xf]
    %v745 = vld [vmem:[#allocation18 + $0x64] sm:$0xf]
    %v746 = vld [vmem:[#allocation18 + $0x68] sm:$0xf]
    %v747 = vld [vmem:[#allocation18 + $0x6c] sm:$0xf]
    %v748 = vld [vmem:[#allocation18 + $0x70] sm:$0xf]
    %v749 = vld [vmem:[#allocation18 + $0x74] sm:$0xf]
    %v750 = vld [vmem:[#allocation18 + $0x78] sm:$0xf]
    %v751 = vld [vmem:[#allocation18 + $0x7c] sm:$0xf]
    %v752 = vld [vmem:[#allocation18 + $0x80] sm:$0xf]
    %v753 = vld [vmem:[#allocation18 + $0x84] sm:$0xf]
    %v754 = vld [vmem:[#allocation18 + $0x88] sm:$0xf]
    %v755 = vld [vmem:[#allocation18 + $0x8c] sm:$0xf]
    %v756 = vld [vmem:[#allocation18 + $0x90] sm:$0xf]
    %v757 = vld [vmem:[#allocation18 + $0x94] sm:$0xf]
    %v758 = vld [vmem:[#allocation18 + $0x98] sm:$0xf]
    %v759 = vld [vmem:[#allocation18 + $0x9c] sm:$0xf]
    %v760 = vld [vmem:[#allocation18 + $0xa0] sm:$0xf]
    %v761 = vld [vmem:[#allocation18 + $0xa4] sm:$0xf]
    %v762 = vld [vmem:[#allocation18 + $0xa8] sm:$0xf]
    %v763 = vld [vmem:[#allocation18 + $0xac] sm:$0xf]
    %v764 = vld [vmem:[#allocation18 + $0xb0] sm:$0xf]
    %v765 = vld [vmem:[#allocation18 + $0xb4] sm:$0xf]
    %v766 = vld [vmem:[#allocation18 + $0xb8] sm:$0xf]
    %v767 = vld [vmem:[#allocation18 + $0xbc] sm:$0xf]
    %v768 = vld [vmem:[#allocation18 + $0xc0] sm:$0xf]
    %v769 = vld [vmem:[#allocation18 + $0xc4] sm:$0xf]
    %v770 = vld [vmem:[#allocation18 + $0xc8] sm:$0xf]
    %v771 = vld [vmem:[#allocation18 + $0xcc] sm:$0xf]
    %v772 = vld [vmem:[#allocation18 + $0xd0] sm:$0xf]
    %v773 = vld [vmem:[#allocation18 + $0xd4] sm:$0xf]
    %v774 = vld [vmem:[#allocation18 + $0xd8] sm:$0xf]
    %v775 = vld [vmem:[#allocation18 + $0xdc] sm:$0xf]
    %v776 = vld [vmem:[#allocation18 + $0xe0] sm:$0xf]
    %v777 = vld [vmem:[#allocation18 + $0xe4] sm:$0xf]
    %v778 = vld [vmem:[#allocation18 + $0xe8] sm:$0xf]
    %v779 = vld [vmem:[#allocation18 + $0xec] sm:$0xf]
    %v780 = vld [vmem:[#allocation18 + $0xf0] sm:$0xf]
    %v781 = vld [vmem:[#allocation18 + $0xf4] sm:$0xf]
    %v782 = vld [vmem:[#allocation18 + $0xf8] sm:$0xf]
    %v783 = vld [vmem:[#allocation18 + $0xfc] sm:$0xf]
    %v784 = vld [vmem:[#allocation20] sm:$0x1]
    %v786 = vperm.slane %v784, 0
    %v852 = vunpack.c.l.b16 %v720
    %v853 = vunpack.c.l.b16 %v721
    %v854 = vunpack.c.l.b16 %v722
    %v855 = vunpack.c.l.b16 %v723
    %v856 = vunpack.c.l.b16 %v724
    %v857 = vunpack.c.l.b16 %v725
    %v858 = vunpack.c.l.b16 %v726
    %v859 = vunpack.c.l.b16 %v727
    %v860 = vunpack.c.l.b16 %v728
    %v861 = vunpack.c.l.b16 %v729
    %v862 = vunpack.c.l.b16 %v730
    %v863 = vunpack.c.l.b16 %v731
    %v864 = vunpack.c.l.b16 %v732
    %v865 = vunpack.c.l.b16 %v733
    %v866 = vunpack.c.l.b16 %v734
    %v867 = vunpack.c.l.b16 %v735
    %v868 = vunpack.c.l.b16 %v736
    %v869 = vunpack.c.l.b16 %v737
    %v870 = vunpack.c.l.b16 %v738
    %v871 = vunpack.c.l.b16 %v739
    %v872 = vunpack.c.l.b16 %v740
    %v873 = vunpack.c.l.b16 %v741
    %v874 = vunpack.c.l.b16 %v742
    %v875 = vunpack.c.l.b16 %v743
    %v876 = vunpack.c.l.b16 %v744
    %v877 = vunpack.c.l.b16 %v745
    %v878 = vunpack.c.l.b16 %v746
    %v879 = vunpack.c.l.b16 %v747
    %v880 = vunpack.c.l.b16 %v748
    %v881 = vunpack.c.l.b16 %v749
    %v882 = vunpack.c.l.b16 %v750
    %v883 = vunpack.c.l.b16 %v751
    %v884 = vunpack.c.l.b16 %v752
    %v885 = vunpack.c.l.b16 %v753
    %v886 = vunpack.c.l.b16 %v754
    %v887 = vunpack.c.l.b16 %v755
    %v888 = vunpack.c.l.b16 %v756
    %v889 = vunpack.c.l.b16 %v757
    %v890 = vunpack.c.l.b16 %v758
    %v891 = vunpack.c.l.b16 %v759
    %v892 = vunpack.c.l.b16 %v760
    %v893 = vunpack.c.l.b16 %v761
    %v894 = vunpack.c.l.b16 %v762
    %v895 = vunpack.c.l.b16 %v763
    %v896 = vunpack.c.l.b16 %v764
    %v897 = vunpack.c.l.b16 %v765
    %v898 = vunpack.c.l.b16 %v766
    %v899 = vunpack.c.l.b16 %v767
    %v900 = vunpack.c.l.b16 %v768
    %v901 = vunpack.c.l.b16 %v769
    %v902 = vunpack.c.l.b16 %v770
    %v903 = vunpack.c.l.b16 %v771
    %v904 = vunpack.c.l.b16 %v772
    %v905 = vunpack.c.l.b16 %v773
    %v906 = vunpack.c.l.b16 %v774
    %v907 = vunpack.c.l.b16 %v775
    %v908 = vunpack.c.l.b16 %v776
    %v909 = vunpack.c.l.b16 %v777
    %v910 = vunpack.c.l.b16 %v778
    %v911 = vunpack.c.l.b16 %v779
    %v912 = vunpack.c.l.b16 %v780
    %v913 = vunpack.c.l.b16 %v781
    %v914 = vunpack.c.l.b16 %v782
    %v915 = vunpack.c.l.b16 %v783
    %v916 = vpack.c.b16 %v853, %v852
    %v917 = vpack.c.b16 %v855, %v854
    %v918 = vpack.c.b16 %v857, %v856
    %v919 = vpack.c.b16 %v859, %v858
    %v920 = vpack.c.b16 %v861, %v860
    %v921 = vpack.c.b16 %v863, %v862
    %v922 = vpack.c.b16 %v865, %v864
    %v923 = vpack.c.b16 %v867, %v866
    %v924 = vpack.c.b16 %v869, %v868
    %v925 = vpack.c.b16 %v871, %v870
    %v926 = vpack.c.b16 %v873, %v872
    %v927 = vpack.c.b16 %v875, %v874
    %v928 = vpack.c.b16 %v877, %v876
    %v929 = vpack.c.b16 %v879, %v878
    %v930 = vpack.c.b16 %v881, %v880
    %v931 = vpack.c.b16 %v883, %v882
    %v932 = vpack.c.b16 %v885, %v884
    %v933 = vpack.c.b16 %v887, %v886
    %v934 = vpack.c.b16 %v889, %v888
    %v935 = vpack.c.b16 %v891, %v890
    %v936 = vpack.c.b16 %v893, %v892
    %v937 = vpack.c.b16 %v895, %v894
    %v938 = vpack.c.b16 %v897, %v896
    %v939 = vpack.c.b16 %v899, %v898
    %v940 = vpack.c.b16 %v901, %v900
    %v941 = vpack.c.b16 %v903, %v902
    %v942 = vpack.c.b16 %v905, %v904
    %v943 = vpack.c.b16 %v907, %v906
    %v944 = vpack.c.b16 %v909, %v908
    %v945 = vpack.c.b16 %v911, %v910
    %v946 = vpack.c.b16 %v913, %v912
    %v947 = vpack.c.b16 %v915, %v914
    %980 = vmatpush.bf16.msra.mxu0 %v923
    %981 = vmatpush.bf16.msra.mxu0 %v922
    %982 = vmatpush.bf16.msra.mxu0 %v921
    %983 = vmatpush.bf16.msra.mxu0 %v920
    %984 = vmatpush.bf16.msra.mxu0 %v919
    %985 = vmatpush.bf16.msra.mxu0 %v918
    %986 = vmatpush.bf16.msra.mxu0 %v917
    %987 = vmatpush.bf16.msra.mxu0 %v916
    %988 = vmatmul.bf16.gmra.mxu0 %v716
    %v989 = vpop.f32.mrf.mxu0
    %v990 = vadd.f32 %v786, %v989
    %v991 = vpop.f32.mrf.mxu0
    %v992 = vadd.f32 %v786, %v991
    %993 = vdwg.mxu0
    %994 = vmatpush.bf16.msra.mxu0 %v931
    %995 = vmatpush.bf16.msra.mxu0 %v930
    %996 = vmatpush.bf16.msra.mxu0 %v929
    %997 = vmatpush.bf16.msra.mxu0 %v928
    %998 = vmatpush.bf16.msra.mxu0 %v927
    %999 = vmatpush.bf16.msra.mxu0 %v926
    %1000 = vmatpush.bf16.msra.mxu0 %v925
    %1001 = vmatpush.bf16.msra.mxu0 %v924
    %1002 = vmatmul.bf16.gmra.mxu0 %v717
    %v1003 = vpop.f32.mrf.mxu0
    %v1004 = vadd.f32 %v990, %v1003
    %v1005 = vpop.f32.mrf.mxu0
    %v1006 = vadd.f32 %v992, %v1005
    %1007 = vdwg.mxu0
    %1008 = vmatpush.bf16.msra.mxu0 %v939
    %1009 = vmatpush.bf16.msra.mxu0 %v938
    %1010 = vmatpush.bf16.msra.mxu0 %v937
    %1011 = vmatpush.bf16.msra.mxu0 %v936
    %1012 = vmatpush.bf16.msra.mxu0 %v935
    %1013 = vmatpush.bf16.msra.mxu0 %v934
    %1014 = vmatpush.bf16.msra.mxu0 %v933
    %1015 = vmatpush.bf16.msra.mxu0 %v932
    %1016 = vmatmul.bf16.gmra.mxu0 %v718
    %v1017 = vpop.f32.mrf.mxu0
    %v1018 = vadd.f32 %v1004, %v1017
    %v1019 = vpop.f32.mrf.mxu0
    %v1020 = vadd.f32 %v1006, %v1019
    %1021 = vdwg.mxu0
    %1022 = vmatpush.bf16.msra.mxu0 %v947
    %1023 = vmatpush.bf16.msra.mxu0 %v946
    %1024 = vmatpush.bf16.msra.mxu0 %v945
    %1025 = vmatpush.bf16.msra.mxu0 %v944
    %1026 = vmatpush.bf16.msra.mxu0 %v943
    %1027 = vmatpush.bf16.msra.mxu0 %v942
    %1028 = vmatpush.bf16.msra.mxu0 %v941
    %1029 = vmatpush.bf16.msra.mxu0 %v940
    %1030 = vmatmul.bf16.gmra.mxu0 %v719
    %v1031 = vpop.f32.mrf.mxu0
    %v1032 = vadd.f32 %v1018, %v1031
    %v1033 = vpop.f32.mrf.mxu0
    %v1034 = vadd.f32 %v1020, %v1033
    %1035 = vdwg.mxu0
    %v1036 = vadd.f32 %v402, %v1032
    %v1037 = vadd.f32 %v403, %v1034
    %v1038 = vld [vmem:[%s13] sm:$0x1]
    %v1039 = vld [vmem:[#allocation21] sm:$0x1]
    %1040 = vadd.xlane.f32.xlu0 %v1036
    %v1041 = vpop.xlane.xlu0 %1040
    %1042 = vadd.xlane.f32.xlu0 %v1037
    %v1043 = vpop.xlane.xlu0 %1042
    %v1044 = vmul.f32 %v1041, %v353
    %v1045 = vmul.f32 %v1043, %v353
    %v1046 = vmul.f32 %v1036, %v1036
    %v1047 = vmul.f32 %v1037, %v1037
    %1048 = vadd.xlane.f32.xlu0 %v1046
    %v1049 = vpop.xlane.xlu0 %1048
    %1050 = vadd.xlane.f32.xlu0 %v1047
    %v1051 = vpop.xlane.xlu0 %1050
    %v1052 = vmul.f32 %v1049, %v353
    %v1053 = vmul.f32 %v1051, %v353
    %v1054 = vmul.f32 %v1044, %v1044
    %v1055 = vmul.f32 %v1045, %v1045
    %v1056 = vsub.f32 %v1052, %v1054
    %v1057 = vsub.f32 %v1053, %v1055
    %v1058 = vsub.f32 %v1036, %v1044
    %v1059 = vsub.f32 %v1037, %v1045
    %v1060 = vadd.f32 %v1056, 1e-05
    %v1061 = vadd.f32 %v1057, 1e-05
    %v1062 = vrsqrt.pop %v1060
    %v1063 = vmul.f32 %v1062, %v1060
    %v1064 = vmul.f32 %v1063, %v1062
    %v1065 = vmul.f32 0.5, %v1064
    %v1066 = vsub.f32 1.5, %v1065
    %v1067 = vmul.f32 %v1062, %v1066
    %vm1068 = vweird.f32 %v1060
    %vm1069 = vweird.f32 %v1062
    %vm1070 = vmor %vm1068, %vm1069
    %v1071 = vsel %vm1070, %v1062, %v1067
    %v1072 = vrsqrt.pop %v1061
    %v1073 = vmul.f32 %v1072, %v1061
    %v1074 = vmul.f32 %v1073, %v1072
    %v1075 = vmul.f32 0.5, %v1074
    %v1076 = vsub.f32 1.5, %v1075
    %v1077 = vmul.f32 %v1072, %v1076
    %vm1078 = vweird.f32 %v1061
    %vm1079 = vweird.f32 %v1072
    %vm1080 = vmor %vm1078, %vm1079
    %v1081 = vsel %vm1080, %v1072, %v1077
    %v1082 = vmul.f32 %v1058, %v1071
    %v1083 = vmul.f32 %v1059, %v1081
    %v1085 = vperm.slane %v1038, 0
    %v1087 = vmul.f32 %v1082, %v1085
    %v1088 = vmul.f32 %v1083, %v1085
    %v1090 = vperm.slane %v1039, 0
    %v1092 = vadd.f32 %v1087, %v1090
    %v1093 = vadd.f32 %v1088, %v1090
    %s1094 = scalar_lea.vmem [#allocation11], 64
    %v1095 = vld [vmem:[%s1094] sm:$0xf]
    %v1096 = vld [vmem:[%s1094 + $0x4] sm:$0xf]
    %v1097 = vld [vmem:[%s1094 + $0x8] sm:$0xf]
    %v1098 = vld [vmem:[%s1094 + $0xc] sm:$0xf]
    %v1099 = vld [vmem:[%s1094 + $0x10] sm:$0xf]
    %v1100 = vld [vmem:[%s1094 + $0x14] sm:$0xf]
    %v1101 = vld [vmem:[%s1094 + $0x18] sm:$0xf]
    %v1102 = vld [vmem:[%s1094 + $0x1c] sm:$0xf]
    %v1103 = vld [vmem:[%s1094 + $0x20] sm:$0xf]
    %v1104 = vld [vmem:[%s1094 + $0x24] sm:$0xf]
    %v1105 = vld [vmem:[%s1094 + $0x28] sm:$0xf]
    %v1106 = vld [vmem:[%s1094 + $0x2c] sm:$0xf]
    %v1107 = vld [vmem:[%s1094 + $0x30] sm:$0xf]
    %v1108 = vld [vmem:[%s1094 + $0x34] sm:$0xf]
    %v1109 = vld [vmem:[%s1094 + $0x38] sm:$0xf]
    %v1110 = vld [vmem:[%s1094 + $0x3c] sm:$0xf]
    %v1111 = vpack.c.bf16 %v1093, %v1092
    %s1112 = scalar_lea.vmem [#allocation12], 1
    %v1113 = vld [vmem:[%s1112] sm:$0x1]
    %v1115 = vperm.slane %v1113, 0
    %v1133 = vunpack.c.l.b16 %v1095
    %v1134 = vunpack.c.l.b16 %v1096
    %v1135 = vunpack.c.l.b16 %v1097
    %v1136 = vunpack.c.l.b16 %v1098
    %v1137 = vunpack.c.l.b16 %v1099
    %v1138 = vunpack.c.l.b16 %v1100
    %v1139 = vunpack.c.l.b16 %v1101
    %v1140 = vunpack.c.l.b16 %v1102
    %v1141 = vunpack.c.l.b16 %v1103
    %v1142 = vunpack.c.l.b16 %v1104
    %v1143 = vunpack.c.l.b16 %v1105
    %v1144 = vunpack.c.l.b16 %v1106
    %v1145 = vunpack.c.l.b16 %v1107
    %v1146 = vunpack.c.l.b16 %v1108
    %v1147 = vunpack.c.l.b16 %v1109
    %v1148 = vunpack.c.l.b16 %v1110
    %v1149 = vpack.c.b16 %v1134, %v1133
    %v1150 = vpack.c.b16 %v1136, %v1135
    %v1151 = vpack.c.b16 %v1138, %v1137
    %v1152 = vpack.c.b16 %v1140, %v1139
    %v1153 = vpack.c.b16 %v1142, %v1141
    %v1154 = vpack.c.b16 %v1144, %v1143
    %v1155 = vpack.c.b16 %v1146, %v1145
    %v1156 = vpack.c.b16 %v1148, %v1147
    %1165 = vmatpush.bf16.msra.mxu0 %v1156
    %1166 = vmatpush.bf16.msra.mxu0 %v1155
    %1167 = vmatpush.bf16.msra.mxu0 %v1154
    %1168 = vmatpush.bf16.msra.mxu0 %v1153
    %1169 = vmatpush.bf16.msra.mxu0 %v1152
    %1170 = vmatpush.bf16.msra.mxu0 %v1151
    %1171 = vmatpush.bf16.msra.mxu0 %v1150
    %1172 = vmatpush.bf16.msra.mxu0 %v1149
    %1173 = vmatmul.bf16.gmra.mxu0 %v1111
    %v1174 = vpop.f32.mrf.mxu0
    %v1175 = vadd.f32 %v1115, %v1174
    %v1176 = vpop.f32.mrf.mxu0
    %v1177 = vadd.f32 %v1115, %v1176
    %1178 = vdwg.mxu0
    %v1179 = vadd.f32 %v1092, %v1175
    %v1180 = vadd.f32 %v1093, %v1177
    %s1181 = scalar_lea.vmem [#allocation14], 1
    %v1182 = vld [vmem:[%s1181] sm:$0x1]
    %s1183 = scalar_lea.vmem [#allocation15], 1
    %v1184 = vld [vmem:[%s1183] sm:$0x1]
    %1185 = vadd.xlane.f32.xlu0 %v1179
    %v1186 = vpop.xlane.xlu0 %1185
    %1187 = vadd.xlane.f32.xlu0 %v1180
    %v1188 = vpop.xlane.xlu0 %1187
    %v1189 = vmul.f32 %v1186, %v353
    %v1190 = vmul.f32 %v1188, %v353
    %v1191 = vmul.f32 %v1179, %v1179
    %v1192 = vmul.f32 %v1180, %v1180
    %1193 = vadd.xlane.f32.xlu0 %v1191
    %v1194 = vpop.xlane.xlu0 %1193
    %1195 = vadd.xlane.f32.xlu0 %v1192
    %v1196 = vpop.xlane.xlu0 %1195
    %v1197 = vmul.f32 %v1194, %v353
    %v1198 = vmul.f32 %v1196, %v353
    %v1199 = vmul.f32 %v1189, %v1189
    %v1200 = vmul.f32 %v1190, %v1190
    %v1201 = vsub.f32 %v1197, %v1199
    %v1202 = vsub.f32 %v1198, %v1200
    %v1203 = vsub.f32 %v1179, %v1189
    %v1204 = vsub.f32 %v1180, %v1190
    %v1205 = vadd.f32 %v1201, 1e-05
    %v1206 = vadd.f32 %v1202, 1e-05
    %v1207 = vrsqrt.pop %v1205
    %v1208 = vmul.f32 %v1207, %v1205
    %v1209 = vmul.f32 %v1208, %v1207
    %v1210 = vmul.f32 0.5, %v1209
    %v1211 = vsub.f32 1.5, %v1210
    %v1212 = vmul.f32 %v1207, %v1211
    %vm1213 = vweird.f32 %v1205
    %vm1214 = vweird.f32 %v1207
    %vm1215 = vmor %vm1213, %vm1214
    %v1216 = vsel %vm1215, %v1207, %v1212
    %v1217 = vrsqrt.pop %v1206
    %v1218 = vmul.f32 %v1217, %v1206
    %v1219 = vmul.f32 %v1218, %v1217
    %v1220 = vmul.f32 0.5, %v1219
    %v1221 = vsub.f32 1.5, %v1220
    %v1222 = vmul.f32 %v1217, %v1221
    %vm1223 = vweird.f32 %v1206
    %vm1224 = vweird.f32 %v1217
    %vm1225 = vmor %vm1223, %vm1224
    %v1226 = vsel %vm1225, %v1217, %v1222
    %v1227 = vmul.f32 %v1203, %v1216
    %v1228 = vmul.f32 %v1204, %v1226
    %v1230 = vperm.slane %v1182, 0
    %v1232 = vmul.f32 %v1227, %v1230
    %v1233 = vmul.f32 %v1228, %v1230
    %v1235 = vperm.slane %v1184, 0
    %v1237 = vadd.f32 %v1232, %v1235
    %v1238 = vadd.f32 %v1233, %v1235
    %s1239 = scalar_lea.vmem [#allocation17], 256
    %v1240 = vld [vmem:[%s1239] sm:$0xff]
    %v1241 = vld [vmem:[%s1239 + $0x8] sm:$0xff]
    %v1242 = vld [vmem:[%s1239 + $0x10] sm:$0xff]
    %v1243 = vld [vmem:[%s1239 + $0x18] sm:$0xff]
    %v1244 = vld [vmem:[%s1239 + $0x20] sm:$0xff]
    %v1245 = vld [vmem:[%s1239 + $0x28] sm:$0xff]
    %v1246 = vld [vmem:[%s1239 + $0x30] sm:$0xff]
    %v1247 = vld [vmem:[%s1239 + $0x38] sm:$0xff]
    %v1248 = vld [vmem:[%s1239 + $0x40] sm:$0xff]
    %v1249 = vld [vmem:[%s1239 + $0x48] sm:$0xff]
    %v1250 = vld [vmem:[%s1239 + $0x50] sm:$0xff]
    %v1251 = vld [vmem:[%s1239 + $0x58] sm:$0xff]
    %v1252 = vld [vmem:[%s1239 + $0x60] sm:$0xff]
    %v1253 = vld [vmem:[%s1239 + $0x68] sm:$0xff]
    %v1254 = vld [vmem:[%s1239 + $0x70] sm:$0xff]
    %v1255 = vld [vmem:[%s1239 + $0x78] sm:$0xff]
    %v1256 = vld [vmem:[%s1239 + $0x80] sm:$0xff]
    %v1257 = vld [vmem:[%s1239 + $0x88] sm:$0xff]
    %v1258 = vld [vmem:[%s1239 + $0x90] sm:$0xff]
    %v1259 = vld [vmem:[%s1239 + $0x98] sm:$0xff]
    %v1260 = vld [vmem:[%s1239 + $0xa0] sm:$0xff]
    %v1261 = vld [vmem:[%s1239 + $0xa8] sm:$0xff]
    %v1262 = vld [vmem:[%s1239 + $0xb0] sm:$0xff]
    %v1263 = vld [vmem:[%s1239 + $0xb8] sm:$0xff]
    %v1264 = vld [vmem:[%s1239 + $0xc0] sm:$0xff]
    %v1265 = vld [vmem:[%s1239 + $0xc8] sm:$0xff]
    %v1266 = vld [vmem:[%s1239 + $0xd0] sm:$0xff]
    %v1267 = vld [vmem:[%s1239 + $0xd8] sm:$0xff]
    %v1268 = vld [vmem:[%s1239 + $0xe0] sm:$0xff]
    %v1269 = vld [vmem:[%s1239 + $0xe8] sm:$0xff]
    %v1270 = vld [vmem:[%s1239 + $0xf0] sm:$0xff]
    %v1271 = vld [vmem:[%s1239 + $0xf8] sm:$0xff]
    %v1272 = vpack.c.bf16 %v1238, %v1237
    %v1305 = vunpack.c.l.b16 %v1240
    %v1306 = vunpack.c.h.b16 %v1240
    %v1307 = vunpack.c.l.b16 %v1241
    %v1308 = vunpack.c.h.b16 %v1241
    %v1309 = vunpack.c.l.b16 %v1242
    %v1310 = vunpack.c.h.b16 %v1242
    %v1311 = vunpack.c.l.b16 %v1243
    %v1312 = vunpack.c.h.b16 %v1243
    %v1313 = vunpack.c.l.b16 %v1244
    %v1314 = vunpack.c.h.b16 %v1244
    %v1315 = vunpack.c.l.b16 %v1245
    %v1316 = vunpack.c.h.b16 %v1245
    %v1317 = vunpack.c.l.b16 %v1246
    %v1318 = vunpack.c.h.b16 %v1246
    %v1319 = vunpack.c.l.b16 %v1247
    %v1320 = vunpack.c.h.b16 %v1247
    %v1321 = vunpack.c.l.b16 %v1248
    %v1322 = vunpack.c.h.b16 %v1248
    %v1323 = vunpack.c.l.b16 %v1249
    %v1324 = vunpack.c.h.b16 %v1249
    %v1325 = vunpack.c.l.b16 %v1250
    %v1326 = vunpack.c.h.b16 %v1250
    %v1327 = vunpack.c.l.b16 %v1251
    %v1328 = vunpack.c.h.b16 %v1251
    %v1329 = vunpack.c.l.b16 %v1252
    %v1330 = vunpack.c.h.b16 %v1252
    %v1331 = vunpack.c.l.b16 %v1253
    %v1332 = vunpack.c.h.b16 %v1253
    %v1333 = vunpack.c.l.b16 %v1254
    %v1334 = vunpack.c.h.b16 %v1254
    %v1335 = vunpack.c.l.b16 %v1255
    %v1336 = vunpack.c.h.b16 %v1255
    %v1337 = vunpack.c.l.b16 %v1256
    %v1338 = vunpack.c.h.b16 %v1256
    %v1339 = vunpack.c.l.b16 %v1257
    %v1340 = vunpack.c.h.b16 %v1257
    %v1341 = vunpack.c.l.b16 %v1258
    %v1342 = vunpack.c.h.b16 %v1258
    %v1343 = vunpack.c.l.b16 %v1259
    %v1344 = vunpack.c.h.b16 %v1259
    %v1345 = vunpack.c.l.b16 %v1260
    %v1346 = vunpack.c.h.b16 %v1260
    %v1347 = vunpack.c.l.b16 %v1261
    %v1348 = vunpack.c.h.b16 %v1261
    %v1349 = vunpack.c.l.b16 %v1262
    %v1350 = vunpack.c.h.b16 %v1262
    %v1351 = vunpack.c.l.b16 %v1263
    %v1352 = vunpack.c.h.b16 %v1263
    %v1353 = vunpack.c.l.b16 %v1264
    %v1354 = vunpack.c.h.b16 %v1264
    %v1355 = vunpack.c.l.b16 %v1265
    %v1356 = vunpack.c.h.b16 %v1265
    %v1357 = vunpack.c.l.b16 %v1266
    %v1358 = vunpack.c.h.b16 %v1266
    %v1359 = vunpack.c.l.b16 %v1267
    %v1360 = vunpack.c.h.b16 %v1267
    %v1361 = vunpack.c.l.b16 %v1268
    %v1362 = vunpack.c.h.b16 %v1268
    %v1363 = vunpack.c.l.b16 %v1269
    %v1364 = vunpack.c.h.b16 %v1269
    %v1365 = vunpack.c.l.b16 %v1270
    %v1366 = vunpack.c.h.b16 %v1270
    %v1367 = vunpack.c.l.b16 %v1271
    %v1368 = vunpack.c.h.b16 %v1271
    %v1369 = vpack.c.b16 %v1309, %v1305
    %v1370 = vpack.c.b16 %v1310, %v1306
    %v1371 = vpack.c.b16 %v1311, %v1307
    %v1372 = vpack.c.b16 %v1312, %v1308
    %v1373 = vpack.c.b16 %v1317, %v1313
    %v1374 = vpack.c.b16 %v1318, %v1314
    %v1375 = vpack.c.b16 %v1319, %v1315
    %v1376 = vpack.c.b16 %v1320, %v1316
    %v1377 = vpack.c.b16 %v1325, %v1321
    %v1378 = vpack.c.b16 %v1326, %v1322
    %v1379 = vpack.c.b16 %v1327, %v1323
    %v1380 = vpack.c.b16 %v1328, %v1324
    %v1381 = vpack.c.b16 %v1333, %v1329
    %v1382 = vpack.c.b16 %v1334, %v1330
    %v1383 = vpack.c.b16 %v1335, %v1331
    %v1384 = vpack.c.b16 %v1336, %v1332
    %v1385 = vpack.c.b16 %v1341, %v1337
    %v1386 = vpack.c.b16 %v1342, %v1338
    %v1387 = vpack.c.b16 %v1343, %v1339
    %v1388 = vpack.c.b16 %v1344, %v1340
    %v1389 = vpack.c.b16 %v1349, %v1345
    %v1390 = vpack.c.b16 %v1350, %v1346
    %v1391 = vpack.c.b16 %v1351, %v1347
    %v1392 = vpack.c.b16 %v1352, %v1348
    %v1393 = vpack.c.b16 %v1357, %v1353
    %v1394 = vpack.c.b16 %v1358, %v1354
    %v1395 = vpack.c.b16 %v1359, %v1355
    %v1396 = vpack.c.b16 %v1360, %v1356
    %v1397 = vpack.c.b16 %v1365, %v1361
    %v1398 = vpack.c.b16 %v1366, %v1362
    %v1399 = vpack.c.b16 %v1367, %v1363
    %v1400 = vpack.c.b16 %v1368, %v1364
    %1433 = vmatpush.bf16.msra.mxu0 %v1397
    %1434 = vmatpush.bf16.msra.mxu0 %v1393
    %1435 = vmatpush.bf16.msra.mxu0 %v1389
    %1436 = vmatpush.bf16.msra.mxu0 %v1385
    %1437 = vmatpush.bf16.msra.mxu0 %v1381
    %1438 = vmatpush.bf16.msra.mxu0 %v1377
    %1439 = vmatpush.bf16.msra.mxu0 %v1373
    %1440 = vmatpush.bf16.msra.mxu0 %v1369
    %1441 = vmatmul.bf16.gmra.mxu0 %v1272
    %v1442 = vpop.f32.mrf.mxu0
    %v1443 = vadd.f32 0.0, %v1442
    %v1444 = vpop.f32.mrf.mxu0
    %v1445 = vadd.f32 0.0, %v1444
    %1446 = vdwg.mxu0
    %1447 = vmatpush.bf16.msra.mxu0 %v1398
    %1448 = vmatpush.bf16.msra.mxu0 %v1394
    %1449 = vmatpush.bf16.msra.mxu0 %v1390
    %1450 = vmatpush.bf16.msra.mxu0 %v1386
    %1451 = vmatpush.bf16.msra.mxu0 %v1382
    %1452 = vmatpush.bf16.msra.mxu0 %v1378
    %1453 = vmatpush.bf16.msra.mxu0 %v1374
    %1454 = vmatpush.bf16.msra.mxu0 %v1370
    %1455 = vmatmul.bf16.gmra.mxu0 %v1272
    %v1456 = vpop.f32.mrf.mxu0
    %v1457 = vadd.f32 0.0, %v1456
    %v1458 = vpop.f32.mrf.mxu0
    %v1459 = vadd.f32 0.0, %v1458
    %1460 = vdwg.mxu0
    %1461 = vmatpush.bf16.msra.mxu0 %v1399
    %1462 = vmatpush.bf16.msra.mxu0 %v1395
    %1463 = vmatpush.bf16.msra.mxu0 %v1391
    %1464 = vmatpush.bf16.msra.mxu0 %v1387
    %1465 = vmatpush.bf16.msra.mxu0 %v1383
    %1466 = vmatpush.bf16.msra.mxu0 %v1379
    %1467 = vmatpush.bf16.msra.mxu0 %v1375
    %1468 = vmatpush.bf16.msra.mxu0 %v1371
    %1469 = vmatmul.bf16.gmra.mxu0 %v1272
    %v1470 = vpop.f32.mrf.mxu0
    %v1471 = vadd.f32 0.0, %v1470
    %v1472 = vpop.f32.mrf.mxu0
    %v1473 = vadd.f32 0.0, %v1472
    %1474 = vdwg.mxu0
    %1475 = vmatpush.bf16.msra.mxu0 %v1400
    %1476 = vmatpush.bf16.msra.mxu0 %v1396
    %1477 = vmatpush.bf16.msra.mxu0 %v1392
    %1478 = vmatpush.bf16.msra.mxu0 %v1388
    %1479 = vmatpush.bf16.msra.mxu0 %v1384
    %1480 = vmatpush.bf16.msra.mxu0 %v1380
    %1481 = vmatpush.bf16.msra.mxu0 %v1376
    %1482 = vmatpush.bf16.msra.mxu0 %v1372
    %1483 = vmatmul.bf16.gmra.mxu0 %v1272
    %v1484 = vpop.f32.mrf.mxu0
    %v1485 = vadd.f32 0.0, %v1484
    %v1486 = vpop.f32.mrf.mxu0
    %v1487 = vadd.f32 0.0, %v1486
    %1488 = vdwg.mxu0
    %v1489 = vpack.c.bf16 %v1457, %v1443
    %v1490 = vpack.c.bf16 %v1485, %v1471
    %v1491 = vpack.c.bf16 %v1459, %v1445
    %v1492 = vpack.c.bf16 %v1487, %v1473
    %s1493 = scalar_lea.vmem %s10, 4
    %v1494 = vld [vmem:[%s1493] sm:$0xf]
    %1496 = vst [vmem:[#allocation1] ss:$9 sm:$0xff] %v1494
    %v1497 = vld [vmem:[#allocation1] sm:$0xff]
    %v1498 = vld [vmem:[#allocation1 + $0x9] sm:$0xff]
    %v1499 = vld [vmem:[#allocation1 + $0x12] sm:$0xff]
    %v1500 = vld [vmem:[#allocation1 + $0x1b] sm:$0xff]
    %v1501 = vpack.i.b16 %v1497, %v1497
    %v1503 = vperm.slane %v1501, 0
    %v1504 = vpack.i.b16 %v1498, %v1498
    %v1506 = vperm.slane %v1504, 0
    %v1507 = vpack.i.b16 %v1499, %v1499
    %v1509 = vperm.slane %v1507, 0
    %v1510 = vpack.i.b16 %v1500, %v1500
    %v1512 = vperm.slane %v1510, 0
    %v1513 = vunpack.c.l.bf16 %v1489
    %v1514 = vunpack.c.h.bf16 %v1489
    %v1515 = vunpack.c.l.bf16 %v1490
    %v1516 = vunpack.c.h.bf16 %v1490
    %v1517 = vunpack.c.l.bf16 %v1491
    %v1518 = vunpack.c.h.bf16 %v1491
    %v1519 = vunpack.c.l.bf16 %v1492
    %v1520 = vunpack.c.h.bf16 %v1492
    %v1521 = vunpack.c.l.bf16 %v1503
    %v1522 = vunpack.c.l.bf16 %v1506
    %v1523 = vunpack.c.l.bf16 %v1509
    %v1524 = vunpack.c.l.bf16 %v1512
    %v1525 = vadd.f32 %v1513, %v1521
    %v1526 = vadd.f32 %v1514, %v1522
    %v1527 = vadd.f32 %v1515, %v1523
    %v1528 = vadd.f32 %v1516, %v1524
    %v1529 = vadd.f32 %v1517, %v1521
    %v1530 = vadd.f32 %v1518, %v1522
    %v1531 = vadd.f32 %v1519, %v1523
    %v1532 = vadd.f32 %v1520, %v1524
    %v1533 = vpack.c.bf16 %v1526, %v1525
    %v1534 = vpack.c.bf16 %v1528, %v1527
    %v1535 = vpack.c.bf16 %v1530, %v1529
    %v1536 = vpack.c.bf16 %v1532, %v1531
    %v1537 = vunpack.c.l.bf16 %v1533
    %v1538 = vunpack.c.h.bf16 %v1533
    %v1539 = vunpack.c.l.bf16 %v1534
    %v1540 = vunpack.c.h.bf16 %v1534
    %v1541 = vunpack.c.l.bf16 %v1535
    %v1542 = vunpack.c.h.bf16 %v1535
    %v1543 = vunpack.c.l.bf16 %v1536
    %v1544 = vunpack.c.h.bf16 %v1536
    %v1545 = vmax.f32 %v1537, 0.0
    %v1546 = vmax.f32 %v1538, 0.0
    %v1547 = vmax.f32 %v1539, 0.0
    %v1548 = vmax.f32 %v1540, 0.0
    %v1549 = vmax.f32 %v1541, 0.0
    %v1550 = vmax.f32 %v1542, 0.0
    %v1551 = vmax.f32 %v1543, 0.0
    %v1552 = vmax.f32 %v1544, 0.0
    %v1553 = vpack.c.bf16 %v1549, %v1545
    %v1554 = vpack.c.bf16 %v1550, %v1546
    %v1555 = vpack.c.bf16 %v1551, %v1547
    %v1556 = vpack.c.bf16 %v1552, %v1548
    %s1557 = scalar_lea.vmem [#allocation18], 256
    %v1558 = vld [vmem:[%s1557] sm:$0xf]
    %v1559 = vld [vmem:[%s1557 + $0x4] sm:$0xf]
    %v1560 = vld [vmem:[%s1557 + $0x8] sm:$0xf]
    %v1561 = vld [vmem:[%s1557 + $0xc] sm:$0xf]
    %v1562 = vld [vmem:[%s1557 + $0x10] sm:$0xf]
    %v1563 = vld [vmem:[%s1557 + $0x14] sm:$0xf]
    %v1564 = vld [vmem:[%s1557 + $0x18] sm:$0xf]
    %v1565 = vld [vmem:[%s1557 + $0x1c] sm:$0xf]
    %v1566 = vld [vmem:[%s1557 + $0x20] sm:$0xf]
    %v1567 = vld [vmem:[%s1557 + $0x24] sm:$0xf]
    %v1568 = vld [vmem:[%s1557 + $0x28] sm:$0xf]
    %v1569 = vld [vmem:[%s1557 + $0x2c] sm:$0xf]
    %v1570 = vld [vmem:[%s1557 + $0x30] sm:$0xf]
    %v1571 = vld [vmem:[%s1557 + $0x34] sm:$0xf]
    %v1572 = vld [vmem:[%s1557 + $0x38] sm:$0xf]
    %v1573 = vld [vmem:[%s1557 + $0x3c] sm:$0xf]
    %v1574 = vld [vmem:[%s1557 + $0x40] sm:$0xf]
    %v1575 = vld [vmem:[%s1557 + $0x44] sm:$0xf]
    %v1576 = vld [vmem:[%s1557 + $0x48] sm:$0xf]
    %v1577 = vld [vmem:[%s1557 + $0x4c] sm:$0xf]
    %v1578 = vld [vmem:[%s1557 + $0x50] sm:$0xf]
    %v1579 = vld [vmem:[%s1557 + $0x54] sm:$0xf]
    %v1580 = vld [vmem:[%s1557 + $0x58] sm:$0xf]
    %v1581 = vld [vmem:[%s1557 + $0x5c] sm:$0xf]
    %v1582 = vld [vmem:[%s1557 + $0x60] sm:$0xf]
    %v1583 = vld [vmem:[%s1557 + $0x64] sm:$0xf]
    %v1584 = vld [vmem:[%s1557 + $0x68] sm:$0xf]
    %v1585 = vld [vmem:[%s1557 + $0x6c] sm:$0xf]
    %v1586 = vld [vmem:[%s1557 + $0x70] sm:$0xf]
    %v1587 = vld [vmem:[%s1557 + $0x74] sm:$0xf]
    %v1588 = vld [vmem:[%s1557 + $0x78] sm:$0xf]
    %v1589 = vld [vmem:[%s1557 + $0x7c] sm:$0xf]
    %v1590 = vld [vmem:[%s1557 + $0x80] sm:$0xf]
    %v1591 = vld [vmem:[%s1557 + $0x84] sm:$0xf]
    %v1592 = vld [vmem:[%s1557 + $0x88] sm:$0xf]
    %v1593 = vld [vmem:[%s1557 + $0x8c] sm:$0xf]
    %v1594 = vld [vmem:[%s1557 + $0x90] sm:$0xf]
    %v1595 = vld [vmem:[%s1557 + $0x94] sm:$0xf]
    %v1596 = vld [vmem:[%s1557 + $0x98] sm:$0xf]
    %v1597 = vld [vmem:[%s1557 + $0x9c] sm:$0xf]
    %v1598 = vld [vmem:[%s1557 + $0xa0] sm:$0xf]
    %v1599 = vld [vmem:[%s1557 + $0xa4] sm:$0xf]
    %v1600 = vld [vmem:[%s1557 + $0xa8] sm:$0xf]
    %v1601 = vld [vmem:[%s1557 + $0xac] sm:$0xf]
    %v1602 = vld [vmem:[%s1557 + $0xb0] sm:$0xf]
    %v1603 = vld [vmem:[%s1557 + $0xb4] sm:$0xf]
    %v1604 = vld [vmem:[%s1557 + $0xb8] sm:$0xf]
    %v1605 = vld [vmem:[%s1557 + $0xbc] sm:$0xf]
    %v1606 = vld [vmem:[%s1557 + $0xc0] sm:$0xf]
    %v1607 = vld [vmem:[%s1557 + $0xc4] sm:$0xf]
    %v1608 = vld [vmem:[%s1557 + $0xc8] sm:$0xf]
    %v1609 = vld [vmem:[%s1557 + $0xcc] sm:$0xf]
    %v1610 = vld [vmem:[%s1557 + $0xd0] sm:$0xf]
    %v1611 = vld [vmem:[%s1557 + $0xd4] sm:$0xf]
    %v1612 = vld [vmem:[%s1557 + $0xd8] sm:$0xf]
    %v1613 = vld [vmem:[%s1557 + $0xdc] sm:$0xf]
    %v1614 = vld [vmem:[%s1557 + $0xe0] sm:$0xf]
    %v1615 = vld [vmem:[%s1557 + $0xe4] sm:$0xf]
    %v1616 = vld [vmem:[%s1557 + $0xe8] sm:$0xf]
    %v1617 = vld [vmem:[%s1557 + $0xec] sm:$0xf]
    %v1618 = vld [vmem:[%s1557 + $0xf0] sm:$0xf]
    %v1619 = vld [vmem:[%s1557 + $0xf4] sm:$0xf]
    %v1620 = vld [vmem:[%s1557 + $0xf8] sm:$0xf]
    %v1621 = vld [vmem:[%s1557 + $0xfc] sm:$0xf]
    %s1622 = scalar_lea.vmem [#allocation20], 1
    %v1623 = vld [vmem:[%s1622] sm:$0x1]
    %v1625 = vperm.slane %v1623, 0
    %v1691 = vunpack.c.l.b16 %v1558
    %v1692 = vunpack.c.l.b16 %v1559
    %v1693 = vunpack.c.l.b16 %v1560
    %v1694 = vunpack.c.l.b16 %v1561
    %v1695 = vunpack.c.l.b16 %v1562
    %v1696 = vunpack.c.l.b16 %v1563
    %v1697 = vunpack.c.l.b16 %v1564
    %v1698 = vunpack.c.l.b16 %v1565
    %v1699 = vunpack.c.l.b16 %v1566
    %v1700 = vunpack.c.l.b16 %v1567
    %v1701 = vunpack.c.l.b16 %v1568
    %v1702 = vunpack.c.l.b16 %v1569
    %v1703 = vunpack.c.l.b16 %v1570
    %v1704 = vunpack.c.l.b16 %v1571
    %v1705 = vunpack.c.l.b16 %v1572
    %v1706 = vunpack.c.l.b16 %v1573
    %v1707 = vunpack.c.l.b16 %v1574
    %v1708 = vunpack.c.l.b16 %v1575
    %v1709 = vunpack.c.l.b16 %v1576
    %v1710 = vunpack.c.l.b16 %v1577
    %v1711 = vunpack.c.l.b16 %v1578
    %v1712 = vunpack.c.l.b16 %v1579
    %v1713 = vunpack.c.l.b16 %v1580
    %v1714 = vunpack.c.l.b16 %v1581
    %v1715 = vunpack.c.l.b16 %v1582
    %v1716 = vunpack.c.l.b16 %v1583
    %v1717 = vunpack.c.l.b16 %v1584
    %v1718 = vunpack.c.l.b16 %v1585
    %v1719 = vunpack.c.l.b16 %v1586
    %v1720 = vunpack.c.l.b16 %v1587
    %v1721 = vunpack.c.l.b16 %v1588
    %v1722 = vunpack.c.l.b16 %v1589
    %v1723 = vunpack.c.l.b16 %v1590
    %v1724 = vunpack.c.l.b16 %v1591
    %v1725 = vunpack.c.l.b16 %v1592
    %v1726 = vunpack.c.l.b16 %v1593
    %v1727 = vunpack.c.l.b16 %v1594
    %v1728 = vunpack.c.l.b16 %v1595
    %v1729 = vunpack.c.l.b16 %v1596
    %v1730 = vunpack.c.l.b16 %v1597
    %v1731 = vunpack.c.l.b16 %v1598
    %v1732 = vunpack.c.l.b16 %v1599
    %v1733 = vunpack.c.l.b16 %v1600
    %v1734 = vunpack.c.l.b16 %v1601
    %v1735 = vunpack.c.l.b16 %v1602
    %v1736 = vunpack.c.l.b16 %v1603
    %v1737 = vunpack.c.l.b16 %v1604
    %v1738 = vunpack.c.l.b16 %v1605
    %v1739 = vunpack.c.l.b16 %v1606
    %v1740 = vunpack.c.l.b16 %v1607
    %v1741 = vunpack.c.l.b16 %v1608
    %v1742 = vunpack.c.l.b16 %v1609
    %v1743 = vunpack.c.l.b16 %v1610
    %v1744 = vunpack.c.l.b16 %v1611
    %v1745 = vunpack.c.l.b16 %v1612
    %v1746 = vunpack.c.l.b16 %v1613
    %v1747 = vunpack.c.l.b16 %v1614
    %v1748 = vunpack.c.l.b16 %v1615
    %v1749 = vunpack.c.l.b16 %v1616
    %v1750 = vunpack.c.l.b16 %v1617
    %v1751 = vunpack.c.l.b16 %v1618
    %v1752 = vunpack.c.l.b16 %v1619
    %v1753 = vunpack.c.l.b16 %v1620
    %v1754 = vunpack.c.l.b16 %v1621
    %v1755 = vpack.c.b16 %v1692, %v1691
    %v1756 = vpack.c.b16 %v1694, %v1693
    %v1757 = vpack.c.b16 %v1696, %v1695
    %v1758 = vpack.c.b16 %v1698, %v1697
    %v1759 = vpack.c.b16 %v1700, %v1699
    %v1760 = vpack.c.b16 %v1702, %v1701
    %v1761 = vpack.c.b16 %v1704, %v1703
    %v1762 = vpack.c.b16 %v1706, %v1705
    %v1763 = vpack.c.b16 %v1708, %v1707
    %v1764 = vpack.c.b16 %v1710, %v1709
    %v1765 = vpack.c.b16 %v1712, %v1711
    %v1766 = vpack.c.b16 %v1714, %v1713
    %v1767 = vpack.c.b16 %v1716, %v1715
    %v1768 = vpack.c.b16 %v1718, %v1717
    %v1769 = vpack.c.b16 %v1720, %v1719
    %v1770 = vpack.c.b16 %v1722, %v1721
    %v1771 = vpack.c.b16 %v1724, %v1723
    %v1772 = vpack.c.b16 %v1726, %v1725
    %v1773 = vpack.c.b16 %v1728, %v1727
    %v1774 = vpack.c.b16 %v1730, %v1729
    %v1775 = vpack.c.b16 %v1732, %v1731
    %v1776 = vpack.c.b16 %v1734, %v1733
    %v1777 = vpack.c.b16 %v1736, %v1735
    %v1778 = vpack.c.b16 %v1738, %v1737
    %v1779 = vpack.c.b16 %v1740, %v1739
    %v1780 = vpack.c.b16 %v1742, %v1741
    %v1781 = vpack.c.b16 %v1744, %v1743
    %v1782 = vpack.c.b16 %v1746, %v1745
    %v1783 = vpack.c.b16 %v1748, %v1747
    %v1784 = vpack.c.b16 %v1750, %v1749
    %v1785 = vpack.c.b16 %v1752, %v1751
    %v1786 = vpack.c.b16 %v1754, %v1753
    %1819 = vmatpush.bf16.msra.mxu0 %v1762
    %1820 = vmatpush.bf16.msra.mxu0 %v1761
    %1821 = vmatpush.bf16.msra.mxu0 %v1760
    %1822 = vmatpush.bf16.msra.mxu0 %v1759
    %1823 = vmatpush.bf16.msra.mxu0 %v1758
    %1824 = vmatpush.bf16.msra.mxu0 %v1757
    %1825 = vmatpush.bf16.msra.mxu0 %v1756
    %1826 = vmatpush.bf16.msra.mxu0 %v1755
    %1827 = vmatmul.bf16.gmra.mxu0 %v1553
    %v1828 = vpop.f32.mrf.mxu0
    %v1829 = vadd.f32 %v1625, %v1828
    %v1830 = vpop.f32.mrf.mxu0
    %v1831 = vadd.f32 %v1625, %v1830
    %1832 = vdwg.mxu0
    %1833 = vmatpush.bf16.msra.mxu0 %v1770
    %1834 = vmatpush.bf16.msra.mxu0 %v1769
    %1835 = vmatpush.bf16.msra.mxu0 %v1768
    %1836 = vmatpush.bf16.msra.mxu0 %v1767
    %1837 = vmatpush.bf16.msra.mxu0 %v1766
    %1838 = vmatpush.bf16.msra.mxu0 %v1765
    %1839 = vmatpush.bf16.msra.mxu0 %v1764
    %1840 = vmatpush.bf16.msra.mxu0 %v1763
    %1841 = vmatmul.bf16.gmra.mxu0 %v1554
    %v1842 = vpop.f32.mrf.mxu0
    %v1843 = vadd.f32 %v1829, %v1842
    %v1844 = vpop.f32.mrf.mxu0
    %v1845 = vadd.f32 %v1831, %v1844
    %1846 = vdwg.mxu0
    %1847 = vmatpush.bf16.msra.mxu0 %v1778
    %1848 = vmatpush.bf16.msra.mxu0 %v1777
    %1849 = vmatpush.bf16.msra.mxu0 %v1776
    %1850 = vmatpush.bf16.msra.mxu0 %v1775
    %1851 = vmatpush.bf16.msra.mxu0 %v1774
    %1852 = vmatpush.bf16.msra.mxu0 %v1773
    %1853 = vmatpush.bf16.msra.mxu0 %v1772
    %1854 = vmatpush.bf16.msra.mxu0 %v1771
    %1855 = vmatmul.bf16.gmra.mxu0 %v1555
    %v1856 = vpop.f32.mrf.mxu0
    %v1857 = vadd.f32 %v1843, %v1856
    %v1858 = vpop.f32.mrf.mxu0
    %v1859 = vadd.f32 %v1845, %v1858
    %1860 = vdwg.mxu0
    %1861 = vmatpush.bf16.msra.mxu0 %v1786
    %1862 = vmatpush.bf16.msra.mxu0 %v1785
    %1863 = vmatpush.bf16.msra.mxu0 %v1784
    %1864 = vmatpush.bf16.msra.mxu0 %v1783
    %1865 = vmatpush.bf16.msra.mxu0 %v1782
    %1866 = vmatpush.bf16.msra.mxu0 %v1781
    %1867 = vmatpush.bf16.msra.mxu0 %v1780
    %1868 = vmatpush.bf16.msra.mxu0 %v1779
    %1869 = vmatmul.bf16.gmra.mxu0 %v1556
    %v1870 = vpop.f32.mrf.mxu0
    %v1871 = vadd.f32 %v1857, %v1870
    %v1872 = vpop.f32.mrf.mxu0
    %v1873 = vadd.f32 %v1859, %v1872
    %1874 = vdwg.mxu0
    %v1875 = vadd.f32 %v1237, %v1871
    %v1876 = vadd.f32 %v1238, %v1873
    %s1877 = scalar_lea.vmem %s13, 1
    %v1878 = vld [vmem:[%s1877] sm:$0x1]
    %s1879 = scalar_lea.vmem [#allocation21], 1
    %v1880 = vld [vmem:[%s1879] sm:$0x1]
    %1881 = vadd.xlane.f32.xlu0 %v1875
    %v1882 = vpop.xlane.xlu0 %1881
    %1883 = vadd.xlane.f32.xlu0 %v1876
    %v1884 = vpop.xlane.xlu0 %1883
    %v1885 = vmul.f32 %v1882, %v353
    %v1886 = vmul.f32 %v1884, %v353
    %v1887 = vmul.f32 %v1875, %v1875
    %v1888 = vmul.f32 %v1876, %v1876
    %1889 = vadd.xlane.f32.xlu0 %v1887
    %v1890 = vpop.xlane.xlu0 %1889
    %1891 = vadd.xlane.f32.xlu0 %v1888
    %v1892 = vpop.xlane.xlu0 %1891
    %v1893 = vmul.f32 %v1890, %v353
    %v1894 = vmul.f32 %v1892, %v353
    %v1895 = vmul.f32 %v1885, %v1885
    %v1896 = vmul.f32 %v1886, %v1886
    %v1897 = vsub.f32 %v1893, %v1895
    %v1898 = vsub.f32 %v1894, %v1896
    %v1899 = vsub.f32 %v1875, %v1885
    %v1900 = vsub.f32 %v1876, %v1886
    %v1901 = vadd.f32 %v1897, 1e-05
    %v1902 = vadd.f32 %v1898, 1e-05
    %v1903 = vrsqrt.pop %v1901
    %v1904 = vmul.f32 %v1903, %v1901
    %v1905 = vmul.f32 %v1904, %v1903
    %v1906 = vmul.f32 0.5, %v1905
    %v1907 = vsub.f32 1.5, %v1906
    %v1908 = vmul.f32 %v1903, %v1907
    %vm1909 = vweird.f32 %v1901
    %vm1910 = vweird.f32 %v1903
    %vm1911 = vmor %vm1909, %vm1910
    %v1912 = vsel %vm1911, %v1903, %v1908
    %v1913 = vrsqrt.pop %v1902
    %v1914 = vmul.f32 %v1913, %v1902
    %v1915 = vmul.f32 %v1914, %v1913
    %v1916 = vmul.f32 0.5, %v1915
    %v1917 = vsub.f32 1.5, %v1916
    %v1918 = vmul.f32 %v1913, %v1917
    %vm1919 = vweird.f32 %v1902
    %vm1920 = vweird.f32 %v1913
    %vm1921 = vmor %vm1919, %vm1920
    %v1922 = vsel %vm1921, %v1913, %v1918
    %v1923 = vmul.f32 %v1899, %v1912
    %v1924 = vmul.f32 %v1900, %v1922
    %v1926 = vperm.slane %v1878, 0
    %v1928 = vmul.f32 %v1923, %v1926
    %v1929 = vmul.f32 %v1924, %v1926
    %v1931 = vperm.slane %v1880, 0
    %v1933 = vadd.f32 %v1928, %v1931
    %v1934 = vadd.f32 %v1929, %v1931
    %v1935 = vld [vmem:[#allocation23] sm:$0xf]
    %v1936 = vld [vmem:[#allocation23 + $0x4] sm:$0xf]
    %v1937 = vld [vmem:[#allocation23 + $0x8] sm:$0xf]
    %v1938 = vld [vmem:[#allocation23 + $0xc] sm:$0xf]
    %v1939 = vld [vmem:[#allocation23 + $0x10] sm:$0xf]
    %v1940 = vld [vmem:[#allocation23 + $0x14] sm:$0xf]
    %v1941 = vld [vmem:[#allocation23 + $0x18] sm:$0xf]
    %v1942 = vld [vmem:[#allocation23 + $0x1c] sm:$0xf]
    %v1943 = vld [vmem:[#allocation23 + $0x20] sm:$0xf]
    %v1944 = vld [vmem:[#allocation23 + $0x24] sm:$0xf]
    %v1945 = vld [vmem:[#allocation23 + $0x28] sm:$0xf]
    %v1946 = vld [vmem:[#allocation23 + $0x2c] sm:$0xf]
    %v1947 = vld [vmem:[#allocation23 + $0x30] sm:$0xf]
    %v1948 = vld [vmem:[#allocation23 + $0x34] sm:$0xf]
    %v1949 = vld [vmem:[#allocation23 + $0x38] sm:$0xf]
    %v1950 = vld [vmem:[#allocation23 + $0x3c] sm:$0xf]
    %v1951 = vpack.c.bf16 %v1934, %v1933
    %v1952 = vld [vmem:[%s16] sm:$0x1]
    %v1954 = vperm.slane %v1952, 0
    %v1972 = vunpack.c.l.b16 %v1935
    %v1973 = vunpack.c.l.b16 %v1936
    %v1974 = vunpack.c.l.b16 %v1937
    %v1975 = vunpack.c.l.b16 %v1938
    %v1976 = vunpack.c.l.b16 %v1939
    %v1977 = vunpack.c.l.b16 %v1940
    %v1978 = vunpack.c.l.b16 %v1941
    %v1979 = vunpack.c.l.b16 %v1942
    %v1980 = vunpack.c.l.b16 %v1943
    %v1981 = vunpack.c.l.b16 %v1944
    %v1982 = vunpack.c.l.b16 %v1945
    %v1983 = vunpack.c.l.b16 %v1946
    %v1984 = vunpack.c.l.b16 %v1947
    %v1985 = vunpack.c.l.b16 %v1948
    %v1986 = vunpack.c.l.b16 %v1949
    %v1987 = vunpack.c.l.b16 %v1950
    %v1988 = vpack.c.b16 %v1973, %v1972
    %v1989 = vpack.c.b16 %v1975, %v1974
    %v1990 = vpack.c.b16 %v1977, %v1976
    %v1991 = vpack.c.b16 %v1979, %v1978
    %v1992 = vpack.c.b16 %v1981, %v1980
    %v1993 = vpack.c.b16 %v1983, %v1982
    %v1994 = vpack.c.b16 %v1985, %v1984
    %v1995 = vpack.c.b16 %v1987, %v1986
    %2004 = vmatpush.bf16.msra.mxu0 %v1995
    %2005 = vmatpush.bf16.msra.mxu0 %v1994
    %2006 = vmatpush.bf16.msra.mxu0 %v1993
    %2007 = vmatpush.bf16.msra.mxu0 %v1992
    %2008 = vmatpush.bf16.msra.mxu0 %v1991
    %2009 = vmatpush.bf16.msra.mxu0 %v1990
    %2010 = vmatpush.bf16.msra.mxu0 %v1989
    %2011 = vmatpush.bf16.msra.mxu0 %v1988
    %2012 = vmatmul.bf16.gmra.mxu0 %v1951
    %v2013 = vpop.f32.mrf.mxu0
    %v2014 = vadd.f32 %v1954, %v2013
    %v2015 = vpop.f32.mrf.mxu0
    %v2016 = vadd.f32 %v1954, %v2015
    %2017 = vdwg.mxu0
    %v2018 = vmax.f32 %v2014, 0.0
    %v2019 = vmax.f32 %v2016, 0.0
    %v2020 = vld [vmem:[%s17] sm:$0xf]
    %v2021 = vpack.c.bf16 %v2019, %v2018
    %2022 = vmatpush.bf16.xpose.msra.mxu0 0
    %2023 = vmatpush.bf16.xpose.msra.mxu0 0
    %2024 = vmatpush.bf16.xpose.msra.mxu0 0
    %2025 = vmatpush.bf16.xpose.msra.mxu0 0
    %2026 = vmatpush.bf16.xpose.msra.mxu0 0
    %2027 = vmatpush.bf16.xpose.msra.mxu0 0
    %2028 = vmatpush.bf16.xpose.msra.mxu0 0
    %2029 = vmatpush.bf16.xpose.msra.mxu0 %v2021
    %2030 = vmatmul.bf16.gmra.mxu0 %v2020
    %v2031 = vpop.f32.mrf.mxu0
    %v2032 = vadd.f32 0.0, %v2031
    %v2033 = vpop.f32.mrf.mxu0
    %2034 = vdwg.mxu0
    %v2035 = vld [vmem:[#allocation2] sm:$0x1]
    %2037 = vset.pattern.permute.xlu0 0
    %2038 = vperm.xlu0 %2037, %v2035
    %v2039 = vpop.permute.xlu0 %2038
    %v2041 = vperm.slane %v2039, 0
    %v2042 = vadd.f32 %v2032, %v2041
    %v2043 = vxor.u32 %v2042, 2147483648
    %v2044 = vmul.f32 %v2043, 1.442695
    %v2045 = vpow.pop %v2044
    %v2046 = vadd.f32 %v2045, 1.0
    %v2047 = vrcp.pop %v2046
    %v2048 = vmul.f32 %v2046, %v2047
    %v2049 = vsub.f32 1.0, %v2048
    %v2050 = vmul.f32 %v2047, %v2049
    %v2051 = vadd.f32 %v2047, %v2050
    %vm2052 = vweird.f32 %v2046
    %vm2053 = vweird.f32 %v2047
    %vm2054 = vmor %vm2052, %vm2053
    %v2055 = vsel %vm2054, %v2047, %v2051
    %v2056 = vand.u32 2147483647, %v2046
    %vm2057 = vcmp.eq.f32.partialorder %v2056, 8.507059e+37
    %v2058 = vand.u32 %v2046, 2147483648
    %v2059 = vor.u32 1.1754944e-38, %v2058
    %v2060 = vsel %vm2057, %v2059, %v2055
    %v2061 = vmul.f32 1.0, %v2060
    %vm2062 = vcmask 122880
    %2063 = vst.msk [vmem:[#allocation24] sm:$0x1] %vm2062, %v2061
    // Predicated region
    $region130: #{tpu_custom_call.1} parent=1 // pred_check
      _
    $region131: #{tpu_custom_call.1} parent=1 // pred_check_branch
      %2065 = sbr.rel (0) target = $region133
    $region132: #{tpu_custom_call.1} parent=1 // pred_region
      %2067 = vsyncadd [#allocation5], 0
      %s2069 = sshll.u32 [#allocation24], 4
      %s2070 = int_to_ptr.vmem [resolvable:$true] %s2069
      %s2071 = sshll.u32 %s19, 4
      %s2072 = int_to_ptr.hbm [resolvable:$true] %s2071
      %2074 = dma.vmem_to_hbm [thread:$0]  %s2070, 16, %s2072, [#allocation5]
    $region133: #{tpu_custom_call.1} parent=1 // pred_fallthru
      _
    // Predicated region
    $region134: #{tpu_custom_call.1} parent=1 // pred_check
      _
    $region135: #{tpu_custom_call.1} parent=1 // pred_check_branch
      %2076 = sbr.rel (0) target = $region137
    $region136: #{tpu_custom_call.1} parent=1 // pred_region
      %2078 = dma.done [#allocation5], 16
    $region137: #{tpu_custom_call.1} parent=1 // pred_fallthru
      _
    %2079 = vsyncpa [#allocation4], 1
    %2080 = vsyncpa [#allocation7], 1
    %2081 = vsyncpa [#allocation10], 1
    %2082 = vsyncpa [#allocation13], 1
    %2083 = vsyncpa [#allocation16], 1
    %2084 = vsyncpa [#allocation19], 1
    %2085 = vsyncpa [#allocation22], 1
    %2086 = vsyncpa [#allocation5], 1

</llo_original>
